<compile_context>
chip_gen: v5e
topology: v5e:2x2
jax: 0.10.0
libtpu: 0.0.40
codegen_flags: <defaults>
</compile_context>

<pallas_src>
import math

import jax
import jax.numpy as jnp
from jax.experimental import pallas as pl
from jax.experimental.pallas import tpu as pltpu


# ----------------------------------------------------------------------------
# Pallas kernel
# ----------------------------------------------------------------------------
def make_decoder_kernel(num_layers: int, total_length: int, batch_padded: int,
                        hidden_size: int, padding_value: float):
    L = num_layers
    T = total_length
    B = batch_padded
    H = hidden_size

    def kernel(*refs):
        it = iter(refs)
        # ---- inputs ----
        x_ref = next(it)          # (T*B, D_in) bf16, time-major rows [t*B + b]
        lens_ref = next(it)       # (B, 1) int32
        h0_ref = next(it)         # (L, B, H) f32
        c0_ref = next(it)         # (L, B, H) f32
        wih0_ref = next(it)       # (D_in, 4H) bf16   layer-0 input weights
        whh0_ref = next(it)       # (H, 4H)   bf16   layer-0 recurrent weights
        b0_ref = next(it)         # (1, 4H)   f32    layer-0 fused bias
        wcat_refs, bias_refs = [], []
        for _ in range(L - 1):
            wcat_refs.append(next(it))   # (2H, 4H) bf16  [Wih^T ; Whh^T]
            bias_refs.append(next(it))   # (1, 4H)  f32
        wlin_ref = next(it)       # (H, D_in) bf16
        blin_ref = next(it)       # (1, D_in) f32
        # ---- outputs ----
        y_ref = next(it)          # (T*B, D_in) f32
        hcT_ref = next(it)        # (2*L*B, H) f32   rows: [h(l=0..L-1), c(l=0..L-1)]
        # ---- scratch ----
        xproj_s = next(it)        # (T*B, 4H) f32  precomputed layer-0 x projection
        ytmp_s = next(it)         # (T*B, H)  f32  masked top-layer hidden per step

        pad = jnp.float32(padding_value)

        # ---- hoisted loads (a handful of vregs, loaded once) ----
        lens = lens_ref[...]                      # (B, 1) int32
        whh0 = whh0_ref[...]                      # (H, 4H) bf16
        b0 = b0_ref[...]                          # (1, 4H) f32
        wcats = [r[...] for r in wcat_refs]       # (2H, 4H) bf16 each
        biases = [r[...] for r in bias_refs]      # (1, 4H) f32 each

        # ---- sequence-length masks hoisted out of the recurrence ----
        # (t < len[b]); independent of the recurrent chain so it can never
        # gate the cell math.
        masks = [(lens > t) for t in range(T)]    # T x (B, 1) bool

        # ---- layer-0 input projection for ALL timesteps: one MXU call ----
        # 2-D end to end (no relayout reshapes), bf16 operands / f32 accum.
        xproj_s[...] = jnp.dot(x_ref[...], wih0_ref[...],
                               preferred_element_type=jnp.float32)

        # ---- initial state in registers (no per-step VMEM round trips) ----
        h = [h0_ref[l] for l in range(L)]         # (B, H) f32 each
        c = [c0_ref[l] for l in range(L)]

        def lstm_cell(gates, h_prev, c_prev, mask):
            # Transcendentals on the full 128-lane gates vreg (2 EUP pushes),
            # then gate extraction.  Gate slices / the xh concat are 32/64-lane
            # XLU moves; at 2-3 XLUs per chip they sit in spare slots (audit in
            # a bundle dump if H grows).
            sig = jax.nn.sigmoid(gates)
            tnh = jnp.tanh(gates)
            i_g = sig[:, 0 * H:1 * H]
            f_g = sig[:, 1 * H:2 * H]
            g_g = tnh[:, 2 * H:3 * H]
            o_g = sig[:, 3 * H:4 * H]
            c_new = f_g * c_prev + i_g * g_g
            h_new = o_g * jnp.tanh(c_new)
            # packed-sequence semantics: freeze state past the sequence end
            c_out = jnp.where(mask, c_new, c_prev)
            h_out = jnp.where(mask, h_new, h_prev)
            return h_out, c_out

        # Fully unrolled time loop (T static, small); state stays in SSA values
        # so the LLO scheduler can overlap the (t, layer) LSTM wavefront.
        for t in range(T):
            mask = masks[t]
            xp = xproj_s[pl.ds(t * B, B), :]      # static offset, off the chain

            # ----- layer 0: recurrent matmul only (x part precomputed) -----
            gates = (xp
                     + jnp.dot(h[0].astype(jnp.bfloat16), whh0,
                               preferred_element_type=jnp.float32)
                     + b0)
            h[0], c[0] = lstm_cell(gates, h[0], c[0], mask)
            inp = h[0]

            # ----- layers >= 1: single fused matmul per layer -----
            for l in range(1, L):
                xh = jnp.concatenate([inp, h[l]], axis=-1).astype(jnp.bfloat16)
                gates = (jnp.dot(xh, wcats[l - 1],
                                 preferred_element_type=jnp.float32)
                         + biases[l - 1])
                h[l], c[l] = lstm_cell(gates, h[l], c[l], mask)
                inp = h[l]

            # pad_packed_sequence: padded positions become `padding_value`.
            # Store is off the dependent chain (nothing reads ytmp_s until
            # after the loop); the Linear is batched afterwards.
            ytmp_s[pl.ds(t * B, B), :] = jnp.where(mask, inp, pad)

        # ---- final states: single contiguous (2L*B, H) slab ----
        for l in range(L):
            hcT_ref[pl.ds(l * B, B), :] = h[l]
            hcT_ref[pl.ds((L + l) * B, B), :] = c[l]

        # ---- batched output Linear over every (padded included) timestep ----
        y_ref[...] = (jnp.dot(ytmp_s[...].astype(jnp.bfloat16), wlin_ref[...],
                              preferred_element_type=jnp.float32)
                      + blin_ref[...])

    return kernel


# ----------------------------------------------------------------------------
# Wrapper (mirrors Decoder.forward)
# ----------------------------------------------------------------------------
def decoder_forward(x, x_seq_lengths, hc, padding_value, max_seq_len,
                    layer_params, lin_w_t, lin_b):
    """x: (B, T, D_in) float32, batch_first like PyTorch.  T must == max_seq_len."""
    h0, c0 = hc
    B, T, D_in = x.shape
    L, _, H = h0.shape
    assert T == max_seq_len

    # Pad the batch to the 8-sublane granularity (padded rows get length 0 so
    # they never update state and are sliced away afterwards).
    Bp = ((B + 7) // 8) * 8
    pad_b = Bp - B
    if pad_b:
        x_p = jnp.pad(x, ((0, pad_b), (0, 0), (0, 0)))
        h0_p = jnp.pad(h0, ((0, 0), (0, pad_b), (0, 0)))
        c0_p = jnp.pad(c0, ((0, 0), (0, pad_b), (0, 0)))
        lens_p = jnp.pad(x_seq_lengths.astype(jnp.int32), (0, pad_b))
    else:
        x_p, h0_p, c0_p = x, h0, c0
        lens_p = x_seq_lengths.astype(jnp.int32)

    # Time-major flatten done in XLA so the kernel never reshapes (reshapes
    # that merge T into the sublane axis are VMEM relayouts on TPU).  x is an
    # MXU operand -> cast to bf16 here.
    x_flat = jnp.transpose(x_p, (1, 0, 2)).reshape(T * Bp, D_in).astype(jnp.bfloat16)
    lens2d = lens_p.reshape(Bp, 1)

    # Weight prep (MXU operands pre-cast to bf16, biases stay f32):
    # layer 0 keeps Wih^T / Whh^T separate (x part is batched outside the
    # recurrence); layers >= 1 get a vertically stacked [Wih^T; Whh^T] so each
    # step issues a single fused matmul.
    wih0_t, whh0_t, b0 = layer_params[0]
    flat_params = [wih0_t.astype(jnp.bfloat16), whh0_t.astype(jnp.bfloat16),
                   b0.reshape(1, -1)]
    for l in range(1, L):
        wih_t, whh_t, b = layer_params[l]
        wcat = jnp.concatenate([wih_t, whh_t], axis=0)      # (2H, 4H)
        flat_params += [wcat.astype(jnp.bfloat16), b.reshape(1, -1)]

    inputs = ([x_flat, lens2d, h0_p, c0_p] + flat_params
              + [lin_w_t.astype(jnp.bfloat16), lin_b.reshape(1, -1)])

    kernel = make_decoder_kernel(L, T, Bp, H, float(padding_value))
    out_shapes = (
        jax.ShapeDtypeStruct((T * Bp, D_in), jnp.float32),   # y, lane-densest 2-D slab
        jax.ShapeDtypeStruct((2 * L * Bp, H), jnp.float32),  # [hT ; cT]
    )
    vmem = lambda: pl.BlockSpec(memory_space=pltpu.MemorySpace.VMEM)

    y_flat, hcT = pl.pallas_call(
        kernel,
        out_shape=out_shapes,
        in_specs=[vmem() for _ in inputs],
        out_specs=(vmem(), vmem()),
        scratch_shapes=[
            pltpu.VMEM((T * Bp, 4 * H), jnp.float32),   # layer-0 x projection
            pltpu.VMEM((T * Bp, H), jnp.float32),       # masked top-layer hiddens
        ],
    )(*inputs)

    # Reshape / transpose back in XLA.
    y = jnp.transpose(y_flat.reshape(T, Bp, D_in), (1, 0, 2))[:B]   # (B, T, D_in)
    hc_all = hcT.reshape(2, L, Bp, H)
    hT = hc_all[0, :, :B]
    cT = hc_all[1, :, :B]
    # pad_packed_sequence also returns the sequence lengths.
    return y, x_seq_lengths, (hT, cT)


# ----------------------------------------------------------------------------
# Pure-JAX reference (same semantics) for sanity checks.
# mxu_dtype=bfloat16 mirrors the kernel's MXU-operand casting exactly.
# ----------------------------------------------------------------------------
def decoder_ref(x, lens, h0, c0, padding_value, layer_params, lin_w_t, lin_b,
                mxu_dtype=jnp.float32):
    B, T, _ = x.shape
    L, _, H = h0.shape

    def mm(a, w):
        return jnp.dot(a.astype(mxu_dtype), w.astype(mxu_dtype),
                       preferred_element_type=jnp.float32)

    h = [h0[l] for l in range(L)]
    c = [c0[l] for l in range(L)]
    ys = []
    for t in range(T):
        mask = (t < lens)[:, None]
        inp = x[:, t, :]
        for l in range(L):
            wih_t, whh_t, b = layer_params[l]
            if l == 0:
                gates = mm(inp, wih_t) + mm(h[l], whh_t) + b
            else:
                wcat = jnp.concatenate([wih_t, whh_t], axis=0)
                gates = mm(jnp.concatenate([inp, h[l]], axis=-1), wcat) + b
            i_g = jax.nn.sigmoid(gates[:, :H])
            f_g = jax.nn.sigmoid(gates[:, H:2 * H])
            g_g = jnp.tanh(gates[:, 2 * H:3 * H])
            o_g = jax.nn.sigmoid(gates[:, 3 * H:4 * H])
            c_new = f_g * c[l] + i_g * g_g
            h_new = o_g * jnp.tanh(c_new)
            c[l] = jnp.where(mask, c_new, c[l])
            h[l] = jnp.where(mask, h_new, h[l])
            inp = h[l]
        y_t = jnp.where(mask, inp, padding_value)
        ys.append(mm(y_t, lin_w_t) + lin_b)
    return jnp.stack(ys, axis=1), jnp.stack(h), jnp.stack(c)


# ----------------------------------------------------------------------------
# Main
# ----------------------------------------------------------------------------
if __name__ == "__main__":
    input_size = 8
    hidden_size = 32
    num_rnn_layers = 2
    batch = 4
    max_seq_len = 10
    padding_value = 0.5

    key = jax.random.PRNGKey(0)
    keys = jax.random.split(key, 6 * num_rnn_layers + 6)
    kidx = iter(range(len(keys)))

    bound = 1.0 / math.sqrt(hidden_size)

    def uni(k, shape):
        return jax.random.uniform(k, shape, jnp.float32, -bound, bound)

    # LSTM parameters (PyTorch layout: W_ih (4H, D_l), W_hh (4H, H), gate order i,f,g,o)
    layer_params = []
    for l in range(num_rnn_layers):
        d_l = input_size if l == 0 else hidden_size
        w_ih = uni(keys[next(kidx)], (4 * hidden_size, d_l))
        w_hh = uni(keys[next(kidx)], (4 * hidden_size, hidden_size))
        b_ih = uni(keys[next(kidx)], (4 * hidden_size,))
        b_hh = uni(keys[next(kidx)], (4 * hidden_size,))
        # pre-transpose + fuse the two biases (exact: b_ih + b_hh)
        layer_params.append((w_ih.T, w_hh.T, b_ih + b_hh))

    # Linear(hidden_size -> input_size)
    lin_w = uni(keys[next(kidx)], (input_size, hidden_size))
    lin_b = uni(keys[next(kidx)], (input_size,))
    lin_w_t = lin_w.T

    # Inputs
    x = jax.random.normal(keys[next(kidx)], (batch, max_seq_len, input_size),
                          jnp.float32)
    h0 = jax.random.normal(keys[next(kidx)], (num_rnn_layers, batch, hidden_size),
                           jnp.float32)
    c0 = jax.random.normal(keys[next(kidx)], (num_rnn_layers, batch, hidden_size),
                           jnp.float32)
    x_seq_lengths = jnp.array([10, 7, 4, 2], dtype=jnp.int32)

    y, out_lens, (hT, cT) = decoder_forward(
        x, x_seq_lengths, (h0, c0), padding_value, max_seq_len,
        layer_params, lin_w_t, lin_b)
    jax.block_until_ready((y, hT, cT))

    assert y.shape == (batch, max_seq_len, input_size)
    assert hT.shape == (num_rnn_layers, batch, hidden_size)
    assert cT.shape == (num_rnn_layers, batch, hidden_size)

    # Tight check against a reference that mirrors the kernel's bf16 MXU
    # operands exactly (validates the kernel implementation).
    y_m, hT_m, cT_m = decoder_ref(
        x, x_seq_lengths, h0, c0, padding_value, layer_params, lin_w_t, lin_b,
        mxu_dtype=jnp.bfloat16)
    assert jnp.allclose(y, y_m, atol=1e-3, rtol=1e-3)
    assert jnp.allclose(hT, hT_m, atol=1e-3, rtol=1e-3)
    assert jnp.allclose(cT, cT_m, atol=1e-3, rtol=1e-3)

    # Loose check against the pure-f32 reference (PyTorch semantics); bf16 MXU
    # operands introduce a small recurrent drift (~1e-3..1e-2 at these sizes).
    y_r, hT_r, cT_r = decoder_ref(
        x, x_seq_lengths, h0, c0, padding_value, layer_params, lin_w_t, lin_b,
        mxu_dtype=jnp.float32)
    assert jnp.allclose(y, y_r, atol=5e-2, rtol=5e-2)
    assert jnp.allclose(hT, hT_r, atol=5e-2, rtol=5e-2)
    assert jnp.allclose(cT, cT_r, atol=5e-2, rtol=5e-2)

    print("KERNEL_OK")
</pallas_src>

<mosaic_0001>
module attributes {stable_mosaic.version = 11 : i64} {
  func.func @kernel(%arg0: memref<80x8xbf16, #tpu.memory_space<vmem>>, %arg1: memref<8x1xi32, #tpu.memory_space<vmem>>, %arg2: memref<2x8x32xf32, #tpu.memory_space<vmem>>, %arg3: memref<2x8x32xf32, #tpu.memory_space<vmem>>, %arg4: memref<8x128xbf16, #tpu.memory_space<vmem>>, %arg5: memref<32x128xbf16, #tpu.memory_space<vmem>>, %arg6: memref<1x128xf32, #tpu.memory_space<vmem>>, %arg7: memref<64x128xbf16, #tpu.memory_space<vmem>>, %arg8: memref<1x128xf32, #tpu.memory_space<vmem>>, %arg9: memref<32x8xbf16, #tpu.memory_space<vmem>>, %arg10: memref<1x8xf32, #tpu.memory_space<vmem>>, %arg11: memref<80x8xf32, #tpu.memory_space<vmem>>, %arg12: memref<32x32xf32, #tpu.memory_space<vmem>>, %arg13: memref<80x128xf32, #tpu.memory_space<vmem>>, %arg14: memref<80x32xf32, #tpu.memory_space<vmem>>) attributes {dimension_semantics = [], scalar_prefetch = 0 : i64, scratch_operands = 2 : i64, tpu.core_type = #tpu.core_type<tc>} {
    %c0 = arith.constant 0 : index
    %c0_0 = arith.constant 0 : index
    %0 = vector.load %arg1[%c0, %c0_0] : memref<8x1xi32, #tpu.memory_space<vmem>>, vector<8x1xi32>
    %c0_1 = arith.constant 0 : index
    %c0_2 = arith.constant 0 : index
    %1 = vector.load %arg5[%c0_1, %c0_2] : memref<32x128xbf16, #tpu.memory_space<vmem>>, vector<32x128xbf16>
    %c0_3 = arith.constant 0 : index
    %c0_4 = arith.constant 0 : index
    %2 = vector.load %arg6[%c0_3, %c0_4] : memref<1x128xf32, #tpu.memory_space<vmem>>, vector<1x128xf32>
    %c0_5 = arith.constant 0 : index
    %c0_6 = arith.constant 0 : index
    %3 = vector.load %arg7[%c0_5, %c0_6] : memref<64x128xbf16, #tpu.memory_space<vmem>>, vector<64x128xbf16>
    %c0_7 = arith.constant 0 : index
    %c0_8 = arith.constant 0 : index
    %4 = vector.load %arg8[%c0_7, %c0_8] : memref<1x128xf32, #tpu.memory_space<vmem>>, vector<1x128xf32>
    %c0_i32 = arith.constant 0 : i32
    %5 = vector.broadcast %c0_i32 : i32 to vector<8x1xi32>
    %6 = arith.cmpi sgt, %0, %5 : vector<8x1xi32>
    %c1_i32 = arith.constant 1 : i32
    %7 = vector.broadcast %c1_i32 : i32 to vector<8x1xi32>
    %8 = arith.cmpi sgt, %0, %7 : vector<8x1xi32>
    %c2_i32 = arith.constant 2 : i32
    %9 = vector.broadcast %c2_i32 : i32 to vector<8x1xi32>
    %10 = arith.cmpi sgt, %0, %9 : vector<8x1xi32>
    %c3_i32 = arith.constant 3 : i32
    %11 = vector.broadcast %c3_i32 : i32 to vector<8x1xi32>
    %12 = arith.cmpi sgt, %0, %11 : vector<8x1xi32>
    %c4_i32 = arith.constant 4 : i32
    %13 = vector.broadcast %c4_i32 : i32 to vector<8x1xi32>
    %14 = arith.cmpi sgt, %0, %13 : vector<8x1xi32>
    %c5_i32 = arith.constant 5 : i32
    %15 = vector.broadcast %c5_i32 : i32 to vector<8x1xi32>
    %16 = arith.cmpi sgt, %0, %15 : vector<8x1xi32>
    %c6_i32 = arith.constant 6 : i32
    %17 = vector.broadcast %c6_i32 : i32 to vector<8x1xi32>
    %18 = arith.cmpi sgt, %0, %17 : vector<8x1xi32>
    %c7_i32 = arith.constant 7 : i32
    %19 = vector.broadcast %c7_i32 : i32 to vector<8x1xi32>
    %20 = arith.cmpi sgt, %0, %19 : vector<8x1xi32>
    %c8_i32 = arith.constant 8 : i32
    %21 = vector.broadcast %c8_i32 : i32 to vector<8x1xi32>
    %22 = arith.cmpi sgt, %0, %21 : vector<8x1xi32>
    %c9_i32 = arith.constant 9 : i32
    %23 = vector.broadcast %c9_i32 : i32 to vector<8x1xi32>
    %24 = arith.cmpi sgt, %0, %23 : vector<8x1xi32>
    %c0_9 = arith.constant 0 : index
    %c0_10 = arith.constant 0 : index
    %25 = vector.load %arg0[%c0_9, %c0_10] : memref<80x8xbf16, #tpu.memory_space<vmem>>, vector<80x8xbf16>
    %c0_11 = arith.constant 0 : index
    %c0_12 = arith.constant 0 : index
    %26 = vector.load %arg4[%c0_11, %c0_12] : memref<8x128xbf16, #tpu.memory_space<vmem>>, vector<8x128xbf16>
    %cst = arith.constant dense<0.000000e+00> : vector<80x128xf32>
    %27 = tpu.matmul %25, %26, %cst {dimension_numbers = #tpu.dot_dimension_numbers<[1], [0], [0], [1], [0, 0, 1, 1], [], []>} : vector<80x8xbf16>, vector<8x128xbf16>, vector<80x128xf32> -> vector<80x128xf32>
    %c0_13 = arith.constant 0 : index
    %c0_14 = arith.constant 0 : index
    %28 = vector.load %arg13[%c0_13, %c0_14] : memref<80x128xf32, #tpu.memory_space<vmem>>, vector<80x128xf32>
    tpu.vector_store %arg13[%c0_13, %c0_14], %27 {strides = array<i32>} : memref<80x128xf32, #tpu.memory_space<vmem>>, vector<80x128xf32>,
    %c0_15 = arith.constant 0 : index
    %c0_16 = arith.constant 0 : index
    %c0_17 = arith.constant 0 : index
    %29 = vector.load %arg2[%c0_15, %c0_16, %c0_17] : memref<2x8x32xf32, #tpu.memory_space<vmem>>, vector<1x8x32xf32>
    %30 = vector.shape_cast %29 : vector<1x8x32xf32> to vector<8x32xf32>
    %c1 = arith.constant 1 : index
    %c0_18 = arith.constant 0 : index
    %c0_19 = arith.constant 0 : index
    %31 = vector.load %arg2[%c1, %c0_18, %c0_19] : memref<2x8x32xf32, #tpu.memory_space<vmem>>, vector<1x8x32xf32>
    %32 = vector.shape_cast %31 : vector<1x8x32xf32> to vector<8x32xf32>
    %c0_20 = arith.constant 0 : index
    %c0_21 = arith.constant 0 : index
    %c0_22 = arith.constant 0 : index
    %33 = vector.load %arg3[%c0_20, %c0_21, %c0_22] : memref<2x8x32xf32, #tpu.memory_space<vmem>>, vector<1x8x32xf32>
    %34 = vector.shape_cast %33 : vector<1x8x32xf32> to vector<8x32xf32>
    %c1_23 = arith.constant 1 : index
    %c0_24 = arith.constant 0 : index
    %c0_25 = arith.constant 0 : index
    %35 = vector.load %arg3[%c1_23, %c0_24, %c0_25] : memref<2x8x32xf32, #tpu.memory_space<vmem>>, vector<1x8x32xf32>
    %36 = vector.shape_cast %35 : vector<1x8x32xf32> to vector<8x32xf32>
    %c0_26 = arith.constant 0 : index
    %c0_27 = arith.constant 0 : index
    %37 = vector.load %arg13[%c0_26, %c0_27] : memref<80x128xf32, #tpu.memory_space<vmem>>, vector<8x128xf32>
    %38 = arith.truncf %30 : vector<8x32xf32> to vector<8x32xbf16>
    %cst_28 = arith.constant dense<0.000000e+00> : vector<8x128xf32>
    %39 = tpu.matmul %38, %1, %cst_28 {dimension_numbers = #tpu.dot_dimension_numbers<[1], [0], [0], [1], [0, 0, 1, 1], [], []>} : vector<8x32xbf16>, vector<32x128xbf16>, vector<8x128xf32> -> vector<8x128xf32>
    %40 = arith.addf %37, %39 : vector<8x128xf32>
    %41 = vector.broadcast %2 : vector<1x128xf32> to vector<8x128xf32>
    %42 = arith.addf %40, %41 : vector<8x128xf32>
    %43 = arith.negf %42 : vector<8x128xf32>
    %44 = math.exp %43 : vector<8x128xf32>
    %cst_29 = arith.constant 1.000000e+00 : f32
    %45 = vector.broadcast %cst_29 : f32 to vector<8x128xf32>
    %46 = arith.addf %45, %44 : vector<8x128xf32>
    %47 = arith.divf %45, %46 : vector<8x128xf32>
    %48 = math.tanh %42 : vector<8x128xf32>
    %49 = vector.extract_strided_slice %47 {offsets = [0, 0], sizes = [8, 32], strides = [1, 1]} : vector<8x128xf32> to vector<8x32xf32>
    %50 = vector.extract_strided_slice %47 {offsets = [0, 32], sizes = [8, 32], strides = [1, 1]} : vector<8x128xf32> to vector<8x32xf32>
    %51 = vector.extract_strided_slice %48 {offsets = [0, 64], sizes = [8, 32], strides = [1, 1]} : vector<8x128xf32> to vector<8x32xf32>
    %52 = vector.extract_strided_slice %47 {offsets = [0, 96], sizes = [8, 32], strides = [1, 1]} : vector<8x128xf32> to vector<8x32xf32>
    %53 = arith.mulf %50, %34 : vector<8x32xf32>
    %54 = arith.mulf %49, %51 : vector<8x32xf32>
    %55 = arith.addf %53, %54 : vector<8x32xf32>
    %56 = math.tanh %55 : vector<8x32xf32>
    %57 = arith.mulf %52, %56 : vector<8x32xf32>
    %58 = vector.shape_cast %6 : vector<8x1xi1> to vector<8x1xi1>
    %59 = vector.broadcast %58 : vector<8x1xi1> to vector<8x32xi1>
    %60 = arith.select %59, %55, %34 : vector<8x32xi1>, vector<8x32xf32>
    %61 = vector.shape_cast %6 : vector<8x1xi1> to vector<8x1xi1>
    %62 = vector.broadcast %61 : vector<8x1xi1> to vector<8x32xi1>
    %63 = arith.select %62, %57, %30 : vector<8x32xi1>, vector<8x32xf32>
    %64 = tpu.concatenate %63, %32 in 1 : vector<8x32xf32>, vector<8x32xf32> -> vector<8x64xf32>
    %65 = arith.truncf %64 : vector<8x64xf32> to vector<8x64xbf16>
    %cst_30 = arith.constant dense<0.000000e+00> : vector<8x128xf32>
    %66 = tpu.matmul %65, %3, %cst_30 {dimension_numbers = #tpu.dot_dimension_numbers<[1], [0], [0], [1], [0, 0, 1, 1], [], []>} : vector<8x64xbf16>, vector<64x128xbf16>, vector<8x128xf32> -> vector<8x128xf32>
    %67 = vector.broadcast %4 : vector<1x128xf32> to vector<8x128xf32>
    %68 = arith.addf %66, %67 : vector<8x128xf32>
    %69 = arith.negf %68 : vector<8x128xf32>
    %70 = math.exp %69 : vector<8x128xf32>
    %cst_31 = arith.constant 1.000000e+00 : f32
    %71 = vector.broadcast %cst_31 : f32 to vector<8x128xf32>
    %72 = arith.addf %71, %70 : vector<8x128xf32>
    %73 = arith.divf %71, %72 : vector<8x128xf32>
    %74 = math.tanh %68 : vector<8x128xf32>
    %75 = vector.extract_strided_slice %73 {offsets = [0, 0], sizes = [8, 32], strides = [1, 1]} : vector<8x128xf32> to vector<8x32xf32>
    %76 = vector.extract_strided_slice %73 {offsets = [0, 32], sizes = [8, 32], strides = [1, 1]} : vector<8x128xf32> to vector<8x32xf32>
    %77 = vector.extract_strided_slice %74 {offsets = [0, 64], sizes = [8, 32], strides = [1, 1]} : vector<8x128xf32> to vector<8x32xf32>
    %78 = vector.extract_strided_slice %73 {offsets = [0, 96], sizes = [8, 32], strides = [1, 1]} : vector<8x128xf32> to vector<8x32xf32>
    %79 = arith.mulf %76, %36 : vector<8x32xf32>
    %80 = arith.mulf %75, %77 : vector<8x32xf32>
    %81 = arith.addf %79, %80 : vector<8x32xf32>
    %82 = math.tanh %81 : vector<8x32xf32>
    %83 = arith.mulf %78, %82 : vector<8x32xf32>
    %84 = vector.shape_cast %6 : vector<8x1xi1> to vector<8x1xi1>
    %85 = vector.broadcast %84 : vector<8x1xi1> to vector<8x32xi1>
    %86 = arith.select %85, %81, %36 : vector<8x32xi1>, vector<8x32xf32>
    %87 = vector.shape_cast %6 : vector<8x1xi1> to vector<8x1xi1>
    %88 = vector.broadcast %87 : vector<8x1xi1> to vector<8x32xi1>
    %89 = arith.select %88, %83, %32 : vector<8x32xi1>, vector<8x32xf32>
    %cst_32 = arith.constant 5.000000e-01 : f32
    %90 = vector.shape_cast %6 : vector<8x1xi1> to vector<8x1xi1>
    %91 = vector.broadcast %90 : vector<8x1xi1> to vector<8x32xi1>
    %92 = vector.broadcast %cst_32 : f32 to vector<8x32xf32>
    %93 = arith.select %91, %89, %92 : vector<8x32xi1>, vector<8x32xf32>
    %c0_33 = arith.constant 0 : index
    %c0_34 = arith.constant 0 : index
    %94 = vector.load %arg14[%c0_33, %c0_34] : memref<80x32xf32, #tpu.memory_space<vmem>>, vector<8x32xf32>
    tpu.vector_store %arg14[%c0_33, %c0_34], %93 {strides = array<i32>} : memref<80x32xf32, #tpu.memory_space<vmem>>, vector<8x32xf32>,
    %c8 = arith.constant 8 : index
    %c0_35 = arith.constant 0 : index
    %95 = vector.load %arg13[%c8, %c0_35] : memref<80x128xf32, #tpu.memory_space<vmem>>, vector<8x128xf32>
    %96 = arith.truncf %63 : vector<8x32xf32> to vector<8x32xbf16>
    %cst_36 = arith.constant dense<0.000000e+00> : vector<8x128xf32>
    %97 = tpu.matmul %96, %1, %cst_36 {dimension_numbers = #tpu.dot_dimension_numbers<[1], [0], [0], [1], [0, 0, 1, 1], [], []>} : vector<8x32xbf16>, vector<32x128xbf16>, vector<8x128xf32> -> vector<8x128xf32>
    %98 = arith.addf %95, %97 : vector<8x128xf32>
    %99 = vector.broadcast %2 : vector<1x128xf32> to vector<8x128xf32>
    %100 = arith.addf %98, %99 : vector<8x128xf32>
    %101 = arith.negf %100 : vector<8x128xf32>
    %102 = math.exp %101 : vector<8x128xf32>
    %cst_37 = arith.constant 1.000000e+00 : f32
    %103 = vector.broadcast %cst_37 : f32 to vector<8x128xf32>
    %104 = arith.addf %103, %102 : vector<8x128xf32>
    %105 = arith.divf %103, %104 : vector<8x128xf32>
    %106 = math.tanh %100 : vector<8x128xf32>
    %107 = vector.extract_strided_slice %105 {offsets = [0, 0], sizes = [8, 32], strides = [1, 1]} : vector<8x128xf32> to vector<8x32xf32>
    %108 = vector.extract_strided_slice %105 {offsets = [0, 32], sizes = [8, 32], strides = [1, 1]} : vector<8x128xf32> to vector<8x32xf32>
    %109 = vector.extract_strided_slice %106 {offsets = [0, 64], sizes = [8, 32], strides = [1, 1]} : vector<8x128xf32> to vector<8x32xf32>
    %110 = vector.extract_strided_slice %105 {offsets = [0, 96], sizes = [8, 32], strides = [1, 1]} : vector<8x128xf32> to vector<8x32xf32>
    %111 = arith.mulf %108, %60 : vector<8x32xf32>
    %112 = arith.mulf %107, %109 : vector<8x32xf32>
    %113 = arith.addf %111, %112 : vector<8x32xf32>
    %114 = math.tanh %113 : vector<8x32xf32>
    %115 = arith.mulf %110, %114 : vector<8x32xf32>
    %116 = vector.shape_cast %8 : vector<8x1xi1> to vector<8x1xi1>
    %117 = vector.broadcast %116 : vector<8x1xi1> to vector<8x32xi1>
    %118 = arith.select %117, %113, %60 : vector<8x32xi1>, vector<8x32xf32>
    %119 = vector.shape_cast %8 : vector<8x1xi1> to vector<8x1xi1>
    %120 = vector.broadcast %119 : vector<8x1xi1> to vector<8x32xi1>
    %121 = arith.select %120, %115, %63 : vector<8x32xi1>, vector<8x32xf32>
    %122 = tpu.concatenate %121, %89 in 1 : vector<8x32xf32>, vector<8x32xf32> -> vector<8x64xf32>
    %123 = arith.truncf %122 : vector<8x64xf32> to vector<8x64xbf16>
    %cst_38 = arith.constant dense<0.000000e+00> : vector<8x128xf32>
    %124 = tpu.matmul %123, %3, %cst_38 {dimension_numbers = #tpu.dot_dimension_numbers<[1], [0], [0], [1], [0, 0, 1, 1], [], []>} : vector<8x64xbf16>, vector<64x128xbf16>, vector<8x128xf32> -> vector<8x128xf32>
    %125 = vector.broadcast %4 : vector<1x128xf32> to vector<8x128xf32>
    %126 = arith.addf %124, %125 : vector<8x128xf32>
    %127 = arith.negf %126 : vector<8x128xf32>
    %128 = math.exp %127 : vector<8x128xf32>
    %cst_39 = arith.constant 1.000000e+00 : f32
    %129 = vector.broadcast %cst_39 : f32 to vector<8x128xf32>
    %130 = arith.addf %129, %128 : vector<8x128xf32>
    %131 = arith.divf %129, %130 : vector<8x128xf32>
    %132 = math.tanh %126 : vector<8x128xf32>
    %133 = vector.extract_strided_slice %131 {offsets = [0, 0], sizes = [8, 32], strides = [1, 1]} : vector<8x128xf32> to vector<8x32xf32>
    %134 = vector.extract_strided_slice %131 {offsets = [0, 32], sizes = [8, 32], strides = [1, 1]} : vector<8x128xf32> to vector<8x32xf32>
    %135 = vector.extract_strided_slice %132 {offsets = [0, 64], sizes = [8, 32], strides = [1, 1]} : vector<8x128xf32> to vector<8x32xf32>
    %136 = vector.extract_strided_slice %131 {offsets = [0, 96], sizes = [8, 32], strides = [1, 1]} : vector<8x128xf32> to vector<8x32xf32>
    %137 = arith.mulf %134, %86 : vector<8x32xf32>
    %138 = arith.mulf %133, %135 : vector<8x32xf32>
    %139 = arith.addf %137, %138 : vector<8x32xf32>
    %140 = math.tanh %139 : vector<8x32xf32>
    %141 = arith.mulf %136, %140 : vector<8x32xf32>
    %142 = vector.shape_cast %8 : vector<8x1xi1> to vector<8x1xi1>
    %143 = vector.broadcast %142 : vector<8x1xi1> to vector<8x32xi1>
    %144 = arith.select %143, %139, %86 : vector<8x32xi1>, vector<8x32xf32>
    %145 = vector.shape_cast %8 : vector<8x1xi1> to vector<8x1xi1>
    %146 = vector.broadcast %145 : vector<8x1xi1> to vector<8x32xi1>
    %147 = arith.select %146, %141, %89 : vector<8x32xi1>, vector<8x32xf32>
    %cst_40 = arith.constant 5.000000e-01 : f32
    %148 = vector.shape_cast %8 : vector<8x1xi1> to vector<8x1xi1>
    %149 = vector.broadcast %148 : vector<8x1xi1> to vector<8x32xi1>
    %150 = vector.broadcast %cst_40 : f32 to vector<8x32xf32>
    %151 = arith.select %149, %147, %150 : vector<8x32xi1>, vector<8x32xf32>
    %c8_41 = arith.constant 8 : index
    %c0_42 = arith.constant 0 : index
    %152 = vector.load %arg14[%c8_41, %c0_42] : memref<80x32xf32, #tpu.memory_space<vmem>>, vector<8x32xf32>
    tpu.vector_store %arg14[%c8_41, %c0_42], %151 {strides = array<i32>} : memref<80x32xf32, #tpu.memory_space<vmem>>, vector<8x32xf32>,
    %c16 = arith.constant 16 : index
    %c0_43 = arith.constant 0 : index
    %153 = vector.load %arg13[%c16, %c0_43] : memref<80x128xf32, #tpu.memory_space<vmem>>, vector<8x128xf32>
    %154 = arith.truncf %121 : vector<8x32xf32> to vector<8x32xbf16>
    %cst_44 = arith.constant dense<0.000000e+00> : vector<8x128xf32>
    %155 = tpu.matmul %154, %1, %cst_44 {dimension_numbers = #tpu.dot_dimension_numbers<[1], [0], [0], [1], [0, 0, 1, 1], [], []>} : vector<8x32xbf16>, vector<32x128xbf16>, vector<8x128xf32> -> vector<8x128xf32>
    %156 = arith.addf %153, %155 : vector<8x128xf32>
    %157 = vector.broadcast %2 : vector<1x128xf32> to vector<8x128xf32>
    %158 = arith.addf %156, %157 : vector<8x128xf32>
    %159 = arith.negf %158 : vector<8x128xf32>
    %160 = math.exp %159 : vector<8x128xf32>
    %cst_45 = arith.constant 1.000000e+00 : f32
    %161 = vector.broadcast %cst_45 : f32 to vector<8x128xf32>
    %162 = arith.addf %161, %160 : vector<8x128xf32>
    %163 = arith.divf %161, %162 : vector<8x128xf32>
    %164 = math.tanh %158 : vector<8x128xf32>
    %165 = vector.extract_strided_slice %163 {offsets = [0, 0], sizes = [8, 32], strides = [1, 1]} : vector<8x128xf32> to vector<8x32xf32>
    %166 = vector.extract_strided_slice %163 {offsets = [0, 32], sizes = [8, 32], strides = [1, 1]} : vector<8x128xf32> to vector<8x32xf32>
    %167 = vector.extract_strided_slice %164 {offsets = [0, 64], sizes = [8, 32], strides = [1, 1]} : vector<8x128xf32> to vector<8x32xf32>
    %168 = vector.extract_strided_slice %163 {offsets = [0, 96], sizes = [8, 32], strides = [1, 1]} : vector<8x128xf32> to vector<8x32xf32>
    %169 = arith.mulf %166, %118 : vector<8x32xf32>
    %170 = arith.mulf %165, %167 : vector<8x32xf32>
    %171 = arith.addf %169, %170 : vector<8x32xf32>
    %172 = math.tanh %171 : vector<8x32xf32>
    %173 = arith.mulf %168, %172 : vector<8x32xf32>
    %174 = vector.shape_cast %10 : vector<8x1xi1> to vector<8x1xi1>
    %175 = vector.broadcast %174 : vector<8x1xi1> to vector<8x32xi1>
    %176 = arith.select %175, %171, %118 : vector<8x32xi1>, vector<8x32xf32>
    %177 = vector.shape_cast %10 : vector<8x1xi1> to vector<8x1xi1>
    %178 = vector.broadcast %177 : vector<8x1xi1> to vector<8x32xi1>
    %179 = arith.select %178, %173, %121 : vector<8x32xi1>, vector<8x32xf32>
    %180 = tpu.concatenate %179, %147 in 1 : vector<8x32xf32>, vector<8x32xf32> -> vector<8x64xf32>
    %181 = arith.truncf %180 : vector<8x64xf32> to vector<8x64xbf16>
    %cst_46 = arith.constant dense<0.000000e+00> : vector<8x128xf32>
    %182 = tpu.matmul %181, %3, %cst_46 {dimension_numbers = #tpu.dot_dimension_numbers<[1], [0], [0], [1], [0, 0, 1, 1], [], []>} : vector<8x64xbf16>, vector<64x128xbf16>, vector<8x128xf32> -> vector<8x128xf32>
    %183 = vector.broadcast %4 : vector<1x128xf32> to vector<8x128xf32>
    %184 = arith.addf %182, %183 : vector<8x128xf32>
    %185 = arith.negf %184 : vector<8x128xf32>
    %186 = math.exp %185 : vector<8x128xf32>
    %cst_47 = arith.constant 1.000000e+00 : f32
    %187 = vector.broadcast %cst_47 : f32 to vector<8x128xf32>
    %188 = arith.addf %187, %186 : vector<8x128xf32>
    %189 = arith.divf %187, %188 : vector<8x128xf32>
    %190 = math.tanh %184 : vector<8x128xf32>
    %191 = vector.extract_strided_slice %189 {offsets = [0, 0], sizes = [8, 32], strides = [1, 1]} : vector<8x128xf32> to vector<8x32xf32>
    %192 = vector.extract_strided_slice %189 {offsets = [0, 32], sizes = [8, 32], strides = [1, 1]} : vector<8x128xf32> to vector<8x32xf32>
    %193 = vector.extract_strided_slice %190 {offsets = [0, 64], sizes = [8, 32], strides = [1, 1]} : vector<8x128xf32> to vector<8x32xf32>
    %194 = vector.extract_strided_slice %189 {offsets = [0, 96], sizes = [8, 32], strides = [1, 1]} : vector<8x128xf32> to vector<8x32xf32>
    %195 = arith.mulf %192, %144 : vector<8x32xf32>
    %196 = arith.mulf %191, %193 : vector<8x32xf32>
    %197 = arith.addf %195, %196 : vector<8x32xf32>
    %198 = math.tanh %197 : vector<8x32xf32>
    %199 = arith.mulf %194, %198 : vector<8x32xf32>
    %200 = vector.shape_cast %10 : vector<8x1xi1> to vector<8x1xi1>
    %201 = vector.broadcast %200 : vector<8x1xi1> to vector<8x32xi1>
    %202 = arith.select %201, %197, %144 : vector<8x32xi1>, vector<8x32xf32>
    %203 = vector.shape_cast %10 : vector<8x1xi1> to vector<8x1xi1>
    %204 = vector.broadcast %203 : vector<8x1xi1> to vector<8x32xi1>
    %205 = arith.select %204, %199, %147 : vector<8x32xi1>, vector<8x32xf32>
    %cst_48 = arith.constant 5.000000e-01 : f32
    %206 = vector.shape_cast %10 : vector<8x1xi1> to vector<8x1xi1>
    %207 = vector.broadcast %206 : vector<8x1xi1> to vector<8x32xi1>
    %208 = vector.broadcast %cst_48 : f32 to vector<8x32xf32>
    %209 = arith.select %207, %205, %208 : vector<8x32xi1>, vector<8x32xf32>
    %c16_49 = arith.constant 16 : index
    %c0_50 = arith.constant 0 : index
    %210 = vector.load %arg14[%c16_49, %c0_50] : memref<80x32xf32, #tpu.memory_space<vmem>>, vector<8x32xf32>
    tpu.vector_store %arg14[%c16_49, %c0_50], %209 {strides = array<i32>} : memref<80x32xf32, #tpu.memory_space<vmem>>, vector<8x32xf32>,
    %c24 = arith.constant 24 : index
    %c0_51 = arith.constant 0 : index
    %211 = vector.load %arg13[%c24, %c0_51] : memref<80x128xf32, #tpu.memory_space<vmem>>, vector<8x128xf32>
    %212 = arith.truncf %179 : vector<8x32xf32> to vector<8x32xbf16>
    %cst_52 = arith.constant dense<0.000000e+00> : vector<8x128xf32>
    %213 = tpu.matmul %212, %1, %cst_52 {dimension_numbers = #tpu.dot_dimension_numbers<[1], [0], [0], [1], [0, 0, 1, 1], [], []>} : vector<8x32xbf16>, vector<32x128xbf16>, vector<8x128xf32> -> vector<8x128xf32>
    %214 = arith.addf %211, %213 : vector<8x128xf32>
    %215 = vector.broadcast %2 : vector<1x128xf32> to vector<8x128xf32>
    %216 = arith.addf %214, %215 : vector<8x128xf32>
    %217 = arith.negf %216 : vector<8x128xf32>
    %218 = math.exp %217 : vector<8x128xf32>
    %cst_53 = arith.constant 1.000000e+00 : f32
    %219 = vector.broadcast %cst_53 : f32 to vector<8x128xf32>
    %220 = arith.addf %219, %218 : vector<8x128xf32>
    %221 = arith.divf %219, %220 : vector<8x128xf32>
    %222 = math.tanh %216 : vector<8x128xf32>
    %223 = vector.extract_strided_slice %221 {offsets = [0, 0], sizes = [8, 32], strides = [1, 1]} : vector<8x128xf32> to vector<8x32xf32>
    %224 = vector.extract_strided_slice %221 {offsets = [0, 32], sizes = [8, 32], strides = [1, 1]} : vector<8x128xf32> to vector<8x32xf32>
    %225 = vector.extract_strided_slice %222 {offsets = [0, 64], sizes = [8, 32], strides = [1, 1]} : vector<8x128xf32> to vector<8x32xf32>
    %226 = vector.extract_strided_slice %221 {offsets = [0, 96], sizes = [8, 32], strides = [1, 1]} : vector<8x128xf32> to vector<8x32xf32>
    %227 = arith.mulf %224, %176 : vector<8x32xf32>
    %228 = arith.mulf %223, %225 : vector<8x32xf32>
    %229 = arith.addf %227, %228 : vector<8x32xf32>
    %230 = math.tanh %229 : vector<8x32xf32>
    %231 = arith.mulf %226, %230 : vector<8x32xf32>
    %232 = vector.shape_cast %12 : vector<8x1xi1> to vector<8x1xi1>
    %233 = vector.broadcast %232 : vector<8x1xi1> to vector<8x32xi1>
    %234 = arith.select %233, %229, %176 : vector<8x32xi1>, vector<8x32xf32>
    %235 = vector.shape_cast %12 : vector<8x1xi1> to vector<8x1xi1>
    %236 = vector.broadcast %235 : vector<8x1xi1> to vector<8x32xi1>
    %237 = arith.select %236, %231, %179 : vector<8x32xi1>, vector<8x32xf32>
    %238 = tpu.concatenate %237, %205 in 1 : vector<8x32xf32>, vector<8x32xf32> -> vector<8x64xf32>
    %239 = arith.truncf %238 : vector<8x64xf32> to vector<8x64xbf16>
    %cst_54 = arith.constant dense<0.000000e+00> : vector<8x128xf32>
    %240 = tpu.matmul %239, %3, %cst_54 {dimension_numbers = #tpu.dot_dimension_numbers<[1], [0], [0], [1], [0, 0, 1, 1], [], []>} : vector<8x64xbf16>, vector<64x128xbf16>, vector<8x128xf32> -> vector<8x128xf32>
    %241 = vector.broadcast %4 : vector<1x128xf32> to vector<8x128xf32>
    %242 = arith.addf %240, %241 : vector<8x128xf32>
    %243 = arith.negf %242 : vector<8x128xf32>
    %244 = math.exp %243 : vector<8x128xf32>
    %cst_55 = arith.constant 1.000000e+00 : f32
    %245 = vector.broadcast %cst_55 : f32 to vector<8x128xf32>
    %246 = arith.addf %245, %244 : vector<8x128xf32>
    %247 = arith.divf %245, %246 : vector<8x128xf32>
    %248 = math.tanh %242 : vector<8x128xf32>
    %249 = vector.extract_strided_slice %247 {offsets = [0, 0], sizes = [8, 32], strides = [1, 1]} : vector<8x128xf32> to vector<8x32xf32>
    %250 = vector.extract_strided_slice %247 {offsets = [0, 32], sizes = [8, 32], strides = [1, 1]} : vector<8x128xf32> to vector<8x32xf32>
    %251 = vector.extract_strided_slice %248 {offsets = [0, 64], sizes = [8, 32], strides = [1, 1]} : vector<8x128xf32> to vector<8x32xf32>
    %252 = vector.extract_strided_slice %247 {offsets = [0, 96], sizes = [8, 32], strides = [1, 1]} : vector<8x128xf32> to vector<8x32xf32>
    %253 = arith.mulf %250, %202 : vector<8x32xf32>
    %254 = arith.mulf %249, %251 : vector<8x32xf32>
    %255 = arith.addf %253, %254 : vector<8x32xf32>
    %256 = math.tanh %255 : vector<8x32xf32>
    %257 = arith.mulf %252, %256 : vector<8x32xf32>
    %258 = vector.shape_cast %12 : vector<8x1xi1> to vector<8x1xi1>
    %259 = vector.broadcast %258 : vector<8x1xi1> to vector<8x32xi1>
    %260 = arith.select %259, %255, %202 : vector<8x32xi1>, vector<8x32xf32>
    %261 = vector.shape_cast %12 : vector<8x1xi1> to vector<8x1xi1>
    %262 = vector.broadcast %261 : vector<8x1xi1> to vector<8x32xi1>
    %263 = arith.select %262, %257, %205 : vector<8x32xi1>, vector<8x32xf32>
    %cst_56 = arith.constant 5.000000e-01 : f32
    %264 = vector.shape_cast %12 : vector<8x1xi1> to vector<8x1xi1>
    %265 = vector.broadcast %264 : vector<8x1xi1> to vector<8x32xi1>
    %266 = vector.broadcast %cst_56 : f32 to vector<8x32xf32>
    %267 = arith.select %265, %263, %266 : vector<8x32xi1>, vector<8x32xf32>
    %c24_57 = arith.constant 24 : index
    %c0_58 = arith.constant 0 : index
    %268 = vector.load %arg14[%c24_57, %c0_58] : memref<80x32xf32, #tpu.memory_space<vmem>>, vector<8x32xf32>
    tpu.vector_store %arg14[%c24_57, %c0_58], %267 {strides = array<i32>} : memref<80x32xf32, #tpu.memory_space<vmem>>, vector<8x32xf32>,
    %c32 = arith.constant 32 : index
    %c0_59 = arith.constant 0 : index
    %269 = vector.load %arg13[%c32, %c0_59] : memref<80x128xf32, #tpu.memory_space<vmem>>, vector<8x128xf32>
    %270 = arith.truncf %237 : vector<8x32xf32> to vector<8x32xbf16>
    %cst_60 = arith.constant dense<0.000000e+00> : vector<8x128xf32>
    %271 = tpu.matmul %270, %1, %cst_60 {dimension_numbers = #tpu.dot_dimension_numbers<[1], [0], [0], [1], [0, 0, 1, 1], [], []>} : vector<8x32xbf16>, vector<32x128xbf16>, vector<8x128xf32> -> vector<8x128xf32>
    %272 = arith.addf %269, %271 : vector<8x128xf32>
    %273 = vector.broadcast %2 : vector<1x128xf32> to vector<8x128xf32>
    %274 = arith.addf %272, %273 : vector<8x128xf32>
    %275 = arith.negf %274 : vector<8x128xf32>
    %276 = math.exp %275 : vector<8x128xf32>
    %cst_61 = arith.constant 1.000000e+00 : f32
    %277 = vector.broadcast %cst_61 : f32 to vector<8x128xf32>
    %278 = arith.addf %277, %276 : vector<8x128xf32>
    %279 = arith.divf %277, %278 : vector<8x128xf32>
    %280 = math.tanh %274 : vector<8x128xf32>
    %281 = vector.extract_strided_slice %279 {offsets = [0, 0], sizes = [8, 32], strides = [1, 1]} : vector<8x128xf32> to vector<8x32xf32>
    %282 = vector.extract_strided_slice %279 {offsets = [0, 32], sizes = [8, 32], strides = [1, 1]} : vector<8x128xf32> to vector<8x32xf32>
    %283 = vector.extract_strided_slice %280 {offsets = [0, 64], sizes = [8, 32], strides = [1, 1]} : vector<8x128xf32> to vector<8x32xf32>
    %284 = vector.extract_strided_slice %279 {offsets = [0, 96], sizes = [8, 32], strides = [1, 1]} : vector<8x128xf32> to vector<8x32xf32>
    %285 = arith.mulf %282, %234 : vector<8x32xf32>
    %286 = arith.mulf %281, %283 : vector<8x32xf32>
    %287 = arith.addf %285, %286 : vector<8x32xf32>
    %288 = math.tanh %287 : vector<8x32xf32>
    %289 = arith.mulf %284, %288 : vector<8x32xf32>
    %290 = vector.shape_cast %14 : vector<8x1xi1> to vector<8x1xi1>
    %291 = vector.broadcast %290 : vector<8x1xi1> to vector<8x32xi1>
    %292 = arith.select %291, %287, %234 : vector<8x32xi1>, vector<8x32xf32>
    %293 = vector.shape_cast %14 : vector<8x1xi1> to vector<8x1xi1>
    %294 = vector.broadcast %293 : vector<8x1xi1> to vector<8x32xi1>
    %295 = arith.select %294, %289, %237 : vector<8x32xi1>, vector<8x32xf32>
    %296 = tpu.concatenate %295, %263 in 1 : vector<8x32xf32>, vector<8x32xf32> -> vector<8x64xf32>
    %297 = arith.truncf %296 : vector<8x64xf32> to vector<8x64xbf16>
    %cst_62 = arith.constant dense<0.000000e+00> : vector<8x128xf32>
    %298 = tpu.matmul %297, %3, %cst_62 {dimension_numbers = #tpu.dot_dimension_numbers<[1], [0], [0], [1], [0, 0, 1, 1], [], []>} : vector<8x64xbf16>, vector<64x128xbf16>, vector<8x128xf32> -> vector<8x128xf32>
    %299 = vector.broadcast %4 : vector<1x128xf32> to vector<8x128xf32>
    %300 = arith.addf %298, %299 : vector<8x128xf32>
    %301 = arith.negf %300 : vector<8x128xf32>
    %302 = math.exp %301 : vector<8x128xf32>
    %cst_63 = arith.constant 1.000000e+00 : f32
    %303 = vector.broadcast %cst_63 : f32 to vector<8x128xf32>
    %304 = arith.addf %303, %302 : vector<8x128xf32>
    %305 = arith.divf %303, %304 : vector<8x128xf32>
    %306 = math.tanh %300 : vector<8x128xf32>
    %307 = vector.extract_strided_slice %305 {offsets = [0, 0], sizes = [8, 32], strides = [1, 1]} : vector<8x128xf32> to vector<8x32xf32>
    %308 = vector.extract_strided_slice %305 {offsets = [0, 32], sizes = [8, 32], strides = [1, 1]} : vector<8x128xf32> to vector<8x32xf32>
    %309 = vector.extract_strided_slice %306 {offsets = [0, 64], sizes = [8, 32], strides = [1, 1]} : vector<8x128xf32> to vector<8x32xf32>
    %310 = vector.extract_strided_slice %305 {offsets = [0, 96], sizes = [8, 32], strides = [1, 1]} : vector<8x128xf32> to vector<8x32xf32>
    %311 = arith.mulf %308, %260 : vector<8x32xf32>
    %312 = arith.mulf %307, %309 : vector<8x32xf32>
    %313 = arith.addf %311, %312 : vector<8x32xf32>
    %314 = math.tanh %313 : vector<8x32xf32>
    %315 = arith.mulf %310, %314 : vector<8x32xf32>
    %316 = vector.shape_cast %14 : vector<8x1xi1> to vector<8x1xi1>
    %317 = vector.broadcast %316 : vector<8x1xi1> to vector<8x32xi1>
    %318 = arith.select %317, %313, %260 : vector<8x32xi1>, vector<8x32xf32>
    %319 = vector.shape_cast %14 : vector<8x1xi1> to vector<8x1xi1>
    %320 = vector.broadcast %319 : vector<8x1xi1> to vector<8x32xi1>
    %321 = arith.select %320, %315, %263 : vector<8x32xi1>, vector<8x32xf32>
    %cst_64 = arith.constant 5.000000e-01 : f32
    %322 = vector.shape_cast %14 : vector<8x1xi1> to vector<8x1xi1>
    %323 = vector.broadcast %322 : vector<8x1xi1> to vector<8x32xi1>
    %324 = vector.broadcast %cst_64 : f32 to vector<8x32xf32>
    %325 = arith.select %323, %321, %324 : vector<8x32xi1>, vector<8x32xf32>
    %c32_65 = arith.constant 32 : index
    %c0_66 = arith.constant 0 : index
    %326 = vector.load %arg14[%c32_65, %c0_66] : memref<80x32xf32, #tpu.memory_space<vmem>>, vector<8x32xf32>
    tpu.vector_store %arg14[%c32_65, %c0_66], %325 {strides = array<i32>} : memref<80x32xf32, #tpu.memory_space<vmem>>, vector<8x32xf32>,
    %c40 = arith.constant 40 : index
    %c0_67 = arith.constant 0 : index
    %327 = vector.load %arg13[%c40, %c0_67] : memref<80x128xf32, #tpu.memory_space<vmem>>, vector<8x128xf32>
    %328 = arith.truncf %295 : vector<8x32xf32> to vector<8x32xbf16>
    %cst_68 = arith.constant dense<0.000000e+00> : vector<8x128xf32>
    %329 = tpu.matmul %328, %1, %cst_68 {dimension_numbers = #tpu.dot_dimension_numbers<[1], [0], [0], [1], [0, 0, 1, 1], [], []>} : vector<8x32xbf16>, vector<32x128xbf16>, vector<8x128xf32> -> vector<8x128xf32>
    %330 = arith.addf %327, %329 : vector<8x128xf32>
    %331 = vector.broadcast %2 : vector<1x128xf32> to vector<8x128xf32>
    %332 = arith.addf %330, %331 : vector<8x128xf32>
    %333 = arith.negf %332 : vector<8x128xf32>
    %334 = math.exp %333 : vector<8x128xf32>
    %cst_69 = arith.constant 1.000000e+00 : f32
    %335 = vector.broadcast %cst_69 : f32 to vector<8x128xf32>
    %336 = arith.addf %335, %334 : vector<8x128xf32>
    %337 = arith.divf %335, %336 : vector<8x128xf32>
    %338 = math.tanh %332 : vector<8x128xf32>
    %339 = vector.extract_strided_slice %337 {offsets = [0, 0], sizes = [8, 32], strides = [1, 1]} : vector<8x128xf32> to vector<8x32xf32>
    %340 = vector.extract_strided_slice %337 {offsets = [0, 32], sizes = [8, 32], strides = [1, 1]} : vector<8x128xf32> to vector<8x32xf32>
    %341 = vector.extract_strided_slice %338 {offsets = [0, 64], sizes = [8, 32], strides = [1, 1]} : vector<8x128xf32> to vector<8x32xf32>
    %342 = vector.extract_strided_slice %337 {offsets = [0, 96], sizes = [8, 32], strides = [1, 1]} : vector<8x128xf32> to vector<8x32xf32>
    %343 = arith.mulf %340, %292 : vector<8x32xf32>
    %344 = arith.mulf %339, %341 : vector<8x32xf32>
    %345 = arith.addf %343, %344 : vector<8x32xf32>
    %346 = math.tanh %345 : vector<8x32xf32>
    %347 = arith.mulf %342, %346 : vector<8x32xf32>
    %348 = vector.shape_cast %16 : vector<8x1xi1> to vector<8x1xi1>
    %349 = vector.broadcast %348 : vector<8x1xi1> to vector<8x32xi1>
    %350 = arith.select %349, %345, %292 : vector<8x32xi1>, vector<8x32xf32>
    %351 = vector.shape_cast %16 : vector<8x1xi1> to vector<8x1xi1>
    %352 = vector.broadcast %351 : vector<8x1xi1> to vector<8x32xi1>
    %353 = arith.select %352, %347, %295 : vector<8x32xi1>, vector<8x32xf32>
    %354 = tpu.concatenate %353, %321 in 1 : vector<8x32xf32>, vector<8x32xf32> -> vector<8x64xf32>
    %355 = arith.truncf %354 : vector<8x64xf32> to vector<8x64xbf16>
    %cst_70 = arith.constant dense<0.000000e+00> : vector<8x128xf32>
    %356 = tpu.matmul %355, %3, %cst_70 {dimension_numbers = #tpu.dot_dimension_numbers<[1], [0], [0], [1], [0, 0, 1, 1], [], []>} : vector<8x64xbf16>, vector<64x128xbf16>, vector<8x128xf32> -> vector<8x128xf32>
    %357 = vector.broadcast %4 : vector<1x128xf32> to vector<8x128xf32>
    %358 = arith.addf %356, %357 : vector<8x128xf32>
    %359 = arith.negf %358 : vector<8x128xf32>
    %360 = math.exp %359 : vector<8x128xf32>
    %cst_71 = arith.constant 1.000000e+00 : f32
    %361 = vector.broadcast %cst_71 : f32 to vector<8x128xf32>
    %362 = arith.addf %361, %360 : vector<8x128xf32>
    %363 = arith.divf %361, %362 : vector<8x128xf32>
    %364 = math.tanh %358 : vector<8x128xf32>
    %365 = vector.extract_strided_slice %363 {offsets = [0, 0], sizes = [8, 32], strides = [1, 1]} : vector<8x128xf32> to vector<8x32xf32>
    %366 = vector.extract_strided_slice %363 {offsets = [0, 32], sizes = [8, 32], strides = [1, 1]} : vector<8x128xf32> to vector<8x32xf32>
    %367 = vector.extract_strided_slice %364 {offsets = [0, 64], sizes = [8, 32], strides = [1, 1]} : vector<8x128xf32> to vector<8x32xf32>
    %368 = vector.extract_strided_slice %363 {offsets = [0, 96], sizes = [8, 32], strides = [1, 1]} : vector<8x128xf32> to vector<8x32xf32>
    %369 = arith.mulf %366, %318 : vector<8x32xf32>
    %370 = arith.mulf %365, %367 : vector<8x32xf32>
    %371 = arith.addf %369, %370 : vector<8x32xf32>
    %372 = math.tanh %371 : vector<8x32xf32>
    %373 = arith.mulf %368, %372 : vector<8x32xf32>
    %374 = vector.shape_cast %16 : vector<8x1xi1> to vector<8x1xi1>
    %375 = vector.broadcast %374 : vector<8x1xi1> to vector<8x32xi1>
    %376 = arith.select %375, %371, %318 : vector<8x32xi1>, vector<8x32xf32>
    %377 = vector.shape_cast %16 : vector<8x1xi1> to vector<8x1xi1>
    %378 = vector.broadcast %377 : vector<8x1xi1> to vector<8x32xi1>
    %379 = arith.select %378, %373, %321 : vector<8x32xi1>, vector<8x32xf32>
    %cst_72 = arith.constant 5.000000e-01 : f32
    %380 = vector.shape_cast %16 : vector<8x1xi1> to vector<8x1xi1>
    %381 = vector.broadcast %380 : vector<8x1xi1> to vector<8x32xi1>
    %382 = vector.broadcast %cst_72 : f32 to vector<8x32xf32>
    %383 = arith.select %381, %379, %382 : vector<8x32xi1>, vector<8x32xf32>
    %c40_73 = arith.constant 40 : index
    %c0_74 = arith.constant 0 : index
    %384 = vector.load %arg14[%c40_73, %c0_74] : memref<80x32xf32, #tpu.memory_space<vmem>>, vector<8x32xf32>
    tpu.vector_store %arg14[%c40_73, %c0_74], %383 {strides = array<i32>} : memref<80x32xf32, #tpu.memory_space<vmem>>, vector<8x32xf32>,
    %c48 = arith.constant 48 : index
    %c0_75 = arith.constant 0 : index
    %385 = vector.load %arg13[%c48, %c0_75] : memref<80x128xf32, #tpu.memory_space<vmem>>, vector<8x128xf32>
    %386 = arith.truncf %353 : vector<8x32xf32> to vector<8x32xbf16>
    %cst_76 = arith.constant dense<0.000000e+00> : vector<8x128xf32>
    %387 = tpu.matmul %386, %1, %cst_76 {dimension_numbers = #tpu.dot_dimension_numbers<[1], [0], [0], [1], [0, 0, 1, 1], [], []>} : vector<8x32xbf16>, vector<32x128xbf16>, vector<8x128xf32> -> vector<8x128xf32>
    %388 = arith.addf %385, %387 : vector<8x128xf32>
    %389 = vector.broadcast %2 : vector<1x128xf32> to vector<8x128xf32>
    %390 = arith.addf %388, %389 : vector<8x128xf32>
    %391 = arith.negf %390 : vector<8x128xf32>
    %392 = math.exp %391 : vector<8x128xf32>
    %cst_77 = arith.constant 1.000000e+00 : f32
    %393 = vector.broadcast %cst_77 : f32 to vector<8x128xf32>
    %394 = arith.addf %393, %392 : vector<8x128xf32>
    %395 = arith.divf %393, %394 : vector<8x128xf32>
    %396 = math.tanh %390 : vector<8x128xf32>
    %397 = vector.extract_strided_slice %395 {offsets = [0, 0], sizes = [8, 32], strides = [1, 1]} : vector<8x128xf32> to vector<8x32xf32>
    %398 = vector.extract_strided_slice %395 {offsets = [0, 32], sizes = [8, 32], strides = [1, 1]} : vector<8x128xf32> to vector<8x32xf32>
    %399 = vector.extract_strided_slice %396 {offsets = [0, 64], sizes = [8, 32], strides = [1, 1]} : vector<8x128xf32> to vector<8x32xf32>
    %400 = vector.extract_strided_slice %395 {offsets = [0, 96], sizes = [8, 32], strides = [1, 1]} : vector<8x128xf32> to vector<8x32xf32>
    %401 = arith.mulf %398, %350 : vector<8x32xf32>
    %402 = arith.mulf %397, %399 : vector<8x32xf32>
    %403 = arith.addf %401, %402 : vector<8x32xf32>
    %404 = math.tanh %403 : vector<8x32xf32>
    %405 = arith.mulf %400, %404 : vector<8x32xf32>
    %406 = vector.shape_cast %18 : vector<8x1xi1> to vector<8x1xi1>
    %407 = vector.broadcast %406 : vector<8x1xi1> to vector<8x32xi1>
    %408 = arith.select %407, %403, %350 : vector<8x32xi1>, vector<8x32xf32>
    %409 = vector.shape_cast %18 : vector<8x1xi1> to vector<8x1xi1>
    %410 = vector.broadcast %409 : vector<8x1xi1> to vector<8x32xi1>
    %411 = arith.select %410, %405, %353 : vector<8x32xi1>, vector<8x32xf32>
    %412 = tpu.concatenate %411, %379 in 1 : vector<8x32xf32>, vector<8x32xf32> -> vector<8x64xf32>
    %413 = arith.truncf %412 : vector<8x64xf32> to vector<8x64xbf16>
    %cst_78 = arith.constant dense<0.000000e+00> : vector<8x128xf32>
    %414 = tpu.matmul %413, %3, %cst_78 {dimension_numbers = #tpu.dot_dimension_numbers<[1], [0], [0], [1], [0, 0, 1, 1], [], []>} : vector<8x64xbf16>, vector<64x128xbf16>, vector<8x128xf32> -> vector<8x128xf32>
    %415 = vector.broadcast %4 : vector<1x128xf32> to vector<8x128xf32>
    %416 = arith.addf %414, %415 : vector<8x128xf32>
    %417 = arith.negf %416 : vector<8x128xf32>
    %418 = math.exp %417 : vector<8x128xf32>
    %cst_79 = arith.constant 1.000000e+00 : f32
    %419 = vector.broadcast %cst_79 : f32 to vector<8x128xf32>
    %420 = arith.addf %419, %418 : vector<8x128xf32>
    %421 = arith.divf %419, %420 : vector<8x128xf32>
    %422 = math.tanh %416 : vector<8x128xf32>
    %423 = vector.extract_strided_slice %421 {offsets = [0, 0], sizes = [8, 32], strides = [1, 1]} : vector<8x128xf32> to vector<8x32xf32>
    %424 = vector.extract_strided_slice %421 {offsets = [0, 32], sizes = [8, 32], strides = [1, 1]} : vector<8x128xf32> to vector<8x32xf32>
    %425 = vector.extract_strided_slice %422 {offsets = [0, 64], sizes = [8, 32], strides = [1, 1]} : vector<8x128xf32> to vector<8x32xf32>
    %426 = vector.extract_strided_slice %421 {offsets = [0, 96], sizes = [8, 32], strides = [1, 1]} : vector<8x128xf32> to vector<8x32xf32>
    %427 = arith.mulf %424, %376 : vector<8x32xf32>
    %428 = arith.mulf %423, %425 : vector<8x32xf32>
    %429 = arith.addf %427, %428 : vector<8x32xf32>
    %430 = math.tanh %429 : vector<8x32xf32>
    %431 = arith.mulf %426, %430 : vector<8x32xf32>
    %432 = vector.shape_cast %18 : vector<8x1xi1> to vector<8x1xi1>
    %433 = vector.broadcast %432 : vector<8x1xi1> to vector<8x32xi1>
    %434 = arith.select %433, %429, %376 : vector<8x32xi1>, vector<8x32xf32>
    %435 = vector.shape_cast %18 : vector<8x1xi1> to vector<8x1xi1>
    %436 = vector.broadcast %435 : vector<8x1xi1> to vector<8x32xi1>
    %437 = arith.select %436, %431, %379 : vector<8x32xi1>, vector<8x32xf32>
    %cst_80 = arith.constant 5.000000e-01 : f32
    %438 = vector.shape_cast %18 : vector<8x1xi1> to vector<8x1xi1>
    %439 = vector.broadcast %438 : vector<8x1xi1> to vector<8x32xi1>
    %440 = vector.broadcast %cst_80 : f32 to vector<8x32xf32>
    %441 = arith.select %439, %437, %440 : vector<8x32xi1>, vector<8x32xf32>
    %c48_81 = arith.constant 48 : index
    %c0_82 = arith.constant 0 : index
    %442 = vector.load %arg14[%c48_81, %c0_82] : memref<80x32xf32, #tpu.memory_space<vmem>>, vector<8x32xf32>
    tpu.vector_store %arg14[%c48_81, %c0_82], %441 {strides = array<i32>} : memref<80x32xf32, #tpu.memory_space<vmem>>, vector<8x32xf32>,
    %c56 = arith.constant 56 : index
    %c0_83 = arith.constant 0 : index
    %443 = vector.load %arg13[%c56, %c0_83] : memref<80x128xf32, #tpu.memory_space<vmem>>, vector<8x128xf32>
    %444 = arith.truncf %411 : vector<8x32xf32> to vector<8x32xbf16>
    %cst_84 = arith.constant dense<0.000000e+00> : vector<8x128xf32>
    %445 = tpu.matmul %444, %1, %cst_84 {dimension_numbers = #tpu.dot_dimension_numbers<[1], [0], [0], [1], [0, 0, 1, 1], [], []>} : vector<8x32xbf16>, vector<32x128xbf16>, vector<8x128xf32> -> vector<8x128xf32>
    %446 = arith.addf %443, %445 : vector<8x128xf32>
    %447 = vector.broadcast %2 : vector<1x128xf32> to vector<8x128xf32>
    %448 = arith.addf %446, %447 : vector<8x128xf32>
    %449 = arith.negf %448 : vector<8x128xf32>
    %450 = math.exp %449 : vector<8x128xf32>
    %cst_85 = arith.constant 1.000000e+00 : f32
    %451 = vector.broadcast %cst_85 : f32 to vector<8x128xf32>
    %452 = arith.addf %451, %450 : vector<8x128xf32>
    %453 = arith.divf %451, %452 : vector<8x128xf32>
    %454 = math.tanh %448 : vector<8x128xf32>
    %455 = vector.extract_strided_slice %453 {offsets = [0, 0], sizes = [8, 32], strides = [1, 1]} : vector<8x128xf32> to vector<8x32xf32>
    %456 = vector.extract_strided_slice %453 {offsets = [0, 32], sizes = [8, 32], strides = [1, 1]} : vector<8x128xf32> to vector<8x32xf32>
    %457 = vector.extract_strided_slice %454 {offsets = [0, 64], sizes = [8, 32], strides = [1, 1]} : vector<8x128xf32> to vector<8x32xf32>
    %458 = vector.extract_strided_slice %453 {offsets = [0, 96], sizes = [8, 32], strides = [1, 1]} : vector<8x128xf32> to vector<8x32xf32>
    %459 = arith.mulf %456, %408 : vector<8x32xf32>
    %460 = arith.mulf %455, %457 : vector<8x32xf32>
    %461 = arith.addf %459, %460 : vector<8x32xf32>
    %462 = math.tanh %461 : vector<8x32xf32>
    %463 = arith.mulf %458, %462 : vector<8x32xf32>
    %464 = vector.shape_cast %20 : vector<8x1xi1> to vector<8x1xi1>
    %465 = vector.broadcast %464 : vector<8x1xi1> to vector<8x32xi1>
    %466 = arith.select %465, %461, %408 : vector<8x32xi1>, vector<8x32xf32>
    %467 = vector.shape_cast %20 : vector<8x1xi1> to vector<8x1xi1>
    %468 = vector.broadcast %467 : vector<8x1xi1> to vector<8x32xi1>
    %469 = arith.select %468, %463, %411 : vector<8x32xi1>, vector<8x32xf32>
    %470 = tpu.concatenate %469, %437 in 1 : vector<8x32xf32>, vector<8x32xf32> -> vector<8x64xf32>
    %471 = arith.truncf %470 : vector<8x64xf32> to vector<8x64xbf16>
    %cst_86 = arith.constant dense<0.000000e+00> : vector<8x128xf32>
    %472 = tpu.matmul %471, %3, %cst_86 {dimension_numbers = #tpu.dot_dimension_numbers<[1], [0], [0], [1], [0, 0, 1, 1], [], []>} : vector<8x64xbf16>, vector<64x128xbf16>, vector<8x128xf32> -> vector<8x128xf32>
    %473 = vector.broadcast %4 : vector<1x128xf32> to vector<8x128xf32>
    %474 = arith.addf %472, %473 : vector<8x128xf32>
    %475 = arith.negf %474 : vector<8x128xf32>
    %476 = math.exp %475 : vector<8x128xf32>
    %cst_87 = arith.constant 1.000000e+00 : f32
    %477 = vector.broadcast %cst_87 : f32 to vector<8x128xf32>
    %478 = arith.addf %477, %476 : vector<8x128xf32>
    %479 = arith.divf %477, %478 : vector<8x128xf32>
    %480 = math.tanh %474 : vector<8x128xf32>
    %481 = vector.extract_strided_slice %479 {offsets = [0, 0], sizes = [8, 32], strides = [1, 1]} : vector<8x128xf32> to vector<8x32xf32>
    %482 = vector.extract_strided_slice %479 {offsets = [0, 32], sizes = [8, 32], strides = [1, 1]} : vector<8x128xf32> to vector<8x32xf32>
    %483 = vector.extract_strided_slice %480 {offsets = [0, 64], sizes = [8, 32], strides = [1, 1]} : vector<8x128xf32> to vector<8x32xf32>
    %484 = vector.extract_strided_slice %479 {offsets = [0, 96], sizes = [8, 32], strides = [1, 1]} : vector<8x128xf32> to vector<8x32xf32>
    %485 = arith.mulf %482, %434 : vector<8x32xf32>
    %486 = arith.mulf %481, %483 : vector<8x32xf32>
    %487 = arith.addf %485, %486 : vector<8x32xf32>
    %488 = math.tanh %487 : vector<8x32xf32>
    %489 = arith.mulf %484, %488 : vector<8x32xf32>
    %490 = vector.shape_cast %20 : vector<8x1xi1> to vector<8x1xi1>
    %491 = vector.broadcast %490 : vector<8x1xi1> to vector<8x32xi1>
    %492 = arith.select %491, %487, %434 : vector<8x32xi1>, vector<8x32xf32>
    %493 = vector.shape_cast %20 : vector<8x1xi1> to vector<8x1xi1>
    %494 = vector.broadcast %493 : vector<8x1xi1> to vector<8x32xi1>
    %495 = arith.select %494, %489, %437 : vector<8x32xi1>, vector<8x32xf32>
    %cst_88 = arith.constant 5.000000e-01 : f32
    %496 = vector.shape_cast %20 : vector<8x1xi1> to vector<8x1xi1>
    %497 = vector.broadcast %496 : vector<8x1xi1> to vector<8x32xi1>
    %498 = vector.broadcast %cst_88 : f32 to vector<8x32xf32>
    %499 = arith.select %497, %495, %498 : vector<8x32xi1>, vector<8x32xf32>
    %c56_89 = arith.constant 56 : index
    %c0_90 = arith.constant 0 : index
    %500 = vector.load %arg14[%c56_89, %c0_90] : memref<80x32xf32, #tpu.memory_space<vmem>>, vector<8x32xf32>
    tpu.vector_store %arg14[%c56_89, %c0_90], %499 {strides = array<i32>} : memref<80x32xf32, #tpu.memory_space<vmem>>, vector<8x32xf32>,
    %c64 = arith.constant 64 : index
    %c0_91 = arith.constant 0 : index
    %501 = vector.load %arg13[%c64, %c0_91] : memref<80x128xf32, #tpu.memory_space<vmem>>, vector<8x128xf32>
    %502 = arith.truncf %469 : vector<8x32xf32> to vector<8x32xbf16>
    %cst_92 = arith.constant dense<0.000000e+00> : vector<8x128xf32>
    %503 = tpu.matmul %502, %1, %cst_92 {dimension_numbers = #tpu.dot_dimension_numbers<[1], [0], [0], [1], [0, 0, 1, 1], [], []>} : vector<8x32xbf16>, vector<32x128xbf16>, vector<8x128xf32> -> vector<8x128xf32>
    %504 = arith.addf %501, %503 : vector<8x128xf32>
    %505 = vector.broadcast %2 : vector<1x128xf32> to vector<8x128xf32>
    %506 = arith.addf %504, %505 : vector<8x128xf32>
    %507 = arith.negf %506 : vector<8x128xf32>
    %508 = math.exp %507 : vector<8x128xf32>
    %cst_93 = arith.constant 1.000000e+00 : f32
    %509 = vector.broadcast %cst_93 : f32 to vector<8x128xf32>
    %510 = arith.addf %509, %508 : vector<8x128xf32>
    %511 = arith.divf %509, %510 : vector<8x128xf32>
    %512 = math.tanh %506 : vector<8x128xf32>
    %513 = vector.extract_strided_slice %511 {offsets = [0, 0], sizes = [8, 32], strides = [1, 1]} : vector<8x128xf32> to vector<8x32xf32>
    %514 = vector.extract_strided_slice %511 {offsets = [0, 32], sizes = [8, 32], strides = [1, 1]} : vector<8x128xf32> to vector<8x32xf32>
    %515 = vector.extract_strided_slice %512 {offsets = [0, 64], sizes = [8, 32], strides = [1, 1]} : vector<8x128xf32> to vector<8x32xf32>
    %516 = vector.extract_strided_slice %511 {offsets = [0, 96], sizes = [8, 32], strides = [1, 1]} : vector<8x128xf32> to vector<8x32xf32>
    %517 = arith.mulf %514, %466 : vector<8x32xf32>
    %518 = arith.mulf %513, %515 : vector<8x32xf32>
    %519 = arith.addf %517, %518 : vector<8x32xf32>
    %520 = math.tanh %519 : vector<8x32xf32>
    %521 = arith.mulf %516, %520 : vector<8x32xf32>
    %522 = vector.shape_cast %22 : vector<8x1xi1> to vector<8x1xi1>
    %523 = vector.broadcast %522 : vector<8x1xi1> to vector<8x32xi1>
    %524 = arith.select %523, %519, %466 : vector<8x32xi1>, vector<8x32xf32>
    %525 = vector.shape_cast %22 : vector<8x1xi1> to vector<8x1xi1>
    %526 = vector.broadcast %525 : vector<8x1xi1> to vector<8x32xi1>
    %527 = arith.select %526, %521, %469 : vector<8x32xi1>, vector<8x32xf32>
    %528 = tpu.concatenate %527, %495 in 1 : vector<8x32xf32>, vector<8x32xf32> -> vector<8x64xf32>
    %529 = arith.truncf %528 : vector<8x64xf32> to vector<8x64xbf16>
    %cst_94 = arith.constant dense<0.000000e+00> : vector<8x128xf32>
    %530 = tpu.matmul %529, %3, %cst_94 {dimension_numbers = #tpu.dot_dimension_numbers<[1], [0], [0], [1], [0, 0, 1, 1], [], []>} : vector<8x64xbf16>, vector<64x128xbf16>, vector<8x128xf32> -> vector<8x128xf32>
    %531 = vector.broadcast %4 : vector<1x128xf32> to vector<8x128xf32>
    %532 = arith.addf %530, %531 : vector<8x128xf32>
    %533 = arith.negf %532 : vector<8x128xf32>
    %534 = math.exp %533 : vector<8x128xf32>
    %cst_95 = arith.constant 1.000000e+00 : f32
    %535 = vector.broadcast %cst_95 : f32 to vector<8x128xf32>
    %536 = arith.addf %535, %534 : vector<8x128xf32>
    %537 = arith.divf %535, %536 : vector<8x128xf32>
    %538 = math.tanh %532 : vector<8x128xf32>
    %539 = vector.extract_strided_slice %537 {offsets = [0, 0], sizes = [8, 32], strides = [1, 1]} : vector<8x128xf32> to vector<8x32xf32>
    %540 = vector.extract_strided_slice %537 {offsets = [0, 32], sizes = [8, 32], strides = [1, 1]} : vector<8x128xf32> to vector<8x32xf32>
    %541 = vector.extract_strided_slice %538 {offsets = [0, 64], sizes = [8, 32], strides = [1, 1]} : vector<8x128xf32> to vector<8x32xf32>
    %542 = vector.extract_strided_slice %537 {offsets = [0, 96], sizes = [8, 32], strides = [1, 1]} : vector<8x128xf32> to vector<8x32xf32>
    %543 = arith.mulf %540, %492 : vector<8x32xf32>
    %544 = arith.mulf %539, %541 : vector<8x32xf32>
    %545 = arith.addf %543, %544 : vector<8x32xf32>
    %546 = math.tanh %545 : vector<8x32xf32>
    %547 = arith.mulf %542, %546 : vector<8x32xf32>
    %548 = vector.shape_cast %22 : vector<8x1xi1> to vector<8x1xi1>
    %549 = vector.broadcast %548 : vector<8x1xi1> to vector<8x32xi1>
    %550 = arith.select %549, %545, %492 : vector<8x32xi1>, vector<8x32xf32>
    %551 = vector.shape_cast %22 : vector<8x1xi1> to vector<8x1xi1>
    %552 = vector.broadcast %551 : vector<8x1xi1> to vector<8x32xi1>
    %553 = arith.select %552, %547, %495 : vector<8x32xi1>, vector<8x32xf32>
    %cst_96 = arith.constant 5.000000e-01 : f32
    %554 = vector.shape_cast %22 : vector<8x1xi1> to vector<8x1xi1>
    %555 = vector.broadcast %554 : vector<8x1xi1> to vector<8x32xi1>
    %556 = vector.broadcast %cst_96 : f32 to vector<8x32xf32>
    %557 = arith.select %555, %553, %556 : vector<8x32xi1>, vector<8x32xf32>
    %c64_97 = arith.constant 64 : index
    %c0_98 = arith.constant 0 : index
    %558 = vector.load %arg14[%c64_97, %c0_98] : memref<80x32xf32, #tpu.memory_space<vmem>>, vector<8x32xf32>
    tpu.vector_store %arg14[%c64_97, %c0_98], %557 {strides = array<i32>} : memref<80x32xf32, #tpu.memory_space<vmem>>, vector<8x32xf32>,
    %c72 = arith.constant 72 : index
    %c0_99 = arith.constant 0 : index
    %559 = vector.load %arg13[%c72, %c0_99] : memref<80x128xf32, #tpu.memory_space<vmem>>, vector<8x128xf32>
    %560 = arith.truncf %527 : vector<8x32xf32> to vector<8x32xbf16>
    %cst_100 = arith.constant dense<0.000000e+00> : vector<8x128xf32>
    %561 = tpu.matmul %560, %1, %cst_100 {dimension_numbers = #tpu.dot_dimension_numbers<[1], [0], [0], [1], [0, 0, 1, 1], [], []>} : vector<8x32xbf16>, vector<32x128xbf16>, vector<8x128xf32> -> vector<8x128xf32>
    %562 = arith.addf %559, %561 : vector<8x128xf32>
    %563 = vector.broadcast %2 : vector<1x128xf32> to vector<8x128xf32>
    %564 = arith.addf %562, %563 : vector<8x128xf32>
    %565 = arith.negf %564 : vector<8x128xf32>
    %566 = math.exp %565 : vector<8x128xf32>
    %cst_101 = arith.constant 1.000000e+00 : f32
    %567 = vector.broadcast %cst_101 : f32 to vector<8x128xf32>
    %568 = arith.addf %567, %566 : vector<8x128xf32>
    %569 = arith.divf %567, %568 : vector<8x128xf32>
    %570 = math.tanh %564 : vector<8x128xf32>
    %571 = vector.extract_strided_slice %569 {offsets = [0, 0], sizes = [8, 32], strides = [1, 1]} : vector<8x128xf32> to vector<8x32xf32>
    %572 = vector.extract_strided_slice %569 {offsets = [0, 32], sizes = [8, 32], strides = [1, 1]} : vector<8x128xf32> to vector<8x32xf32>
    %573 = vector.extract_strided_slice %570 {offsets = [0, 64], sizes = [8, 32], strides = [1, 1]} : vector<8x128xf32> to vector<8x32xf32>
    %574 = vector.extract_strided_slice %569 {offsets = [0, 96], sizes = [8, 32], strides = [1, 1]} : vector<8x128xf32> to vector<8x32xf32>
    %575 = arith.mulf %572, %524 : vector<8x32xf32>
    %576 = arith.mulf %571, %573 : vector<8x32xf32>
    %577 = arith.addf %575, %576 : vector<8x32xf32>
    %578 = math.tanh %577 : vector<8x32xf32>
    %579 = arith.mulf %574, %578 : vector<8x32xf32>
    %580 = vector.shape_cast %24 : vector<8x1xi1> to vector<8x1xi1>
    %581 = vector.broadcast %580 : vector<8x1xi1> to vector<8x32xi1>
    %582 = arith.select %581, %577, %524 : vector<8x32xi1>, vector<8x32xf32>
    %583 = vector.shape_cast %24 : vector<8x1xi1> to vector<8x1xi1>
    %584 = vector.broadcast %583 : vector<8x1xi1> to vector<8x32xi1>
    %585 = arith.select %584, %579, %527 : vector<8x32xi1>, vector<8x32xf32>
    %586 = tpu.concatenate %585, %553 in 1 : vector<8x32xf32>, vector<8x32xf32> -> vector<8x64xf32>
    %587 = arith.truncf %586 : vector<8x64xf32> to vector<8x64xbf16>
    %cst_102 = arith.constant dense<0.000000e+00> : vector<8x128xf32>
    %588 = tpu.matmul %587, %3, %cst_102 {dimension_numbers = #tpu.dot_dimension_numbers<[1], [0], [0], [1], [0, 0, 1, 1], [], []>} : vector<8x64xbf16>, vector<64x128xbf16>, vector<8x128xf32> -> vector<8x128xf32>
    %589 = vector.broadcast %4 : vector<1x128xf32> to vector<8x128xf32>
    %590 = arith.addf %588, %589 : vector<8x128xf32>
    %591 = arith.negf %590 : vector<8x128xf32>
    %592 = math.exp %591 : vector<8x128xf32>
    %cst_103 = arith.constant 1.000000e+00 : f32
    %593 = vector.broadcast %cst_103 : f32 to vector<8x128xf32>
    %594 = arith.addf %593, %592 : vector<8x128xf32>
    %595 = arith.divf %593, %594 : vector<8x128xf32>
    %596 = math.tanh %590 : vector<8x128xf32>
    %597 = vector.extract_strided_slice %595 {offsets = [0, 0], sizes = [8, 32], strides = [1, 1]} : vector<8x128xf32> to vector<8x32xf32>
    %598 = vector.extract_strided_slice %595 {offsets = [0, 32], sizes = [8, 32], strides = [1, 1]} : vector<8x128xf32> to vector<8x32xf32>
    %599 = vector.extract_strided_slice %596 {offsets = [0, 64], sizes = [8, 32], strides = [1, 1]} : vector<8x128xf32> to vector<8x32xf32>
    %600 = vector.extract_strided_slice %595 {offsets = [0, 96], sizes = [8, 32], strides = [1, 1]} : vector<8x128xf32> to vector<8x32xf32>
    %601 = arith.mulf %598, %550 : vector<8x32xf32>
    %602 = arith.mulf %597, %599 : vector<8x32xf32>
    %603 = arith.addf %601, %602 : vector<8x32xf32>
    %604 = math.tanh %603 : vector<8x32xf32>
    %605 = arith.mulf %600, %604 : vector<8x32xf32>
    %606 = vector.shape_cast %24 : vector<8x1xi1> to vector<8x1xi1>
    %607 = vector.broadcast %606 : vector<8x1xi1> to vector<8x32xi1>
    %608 = arith.select %607, %603, %550 : vector<8x32xi1>, vector<8x32xf32>
    %609 = vector.shape_cast %24 : vector<8x1xi1> to vector<8x1xi1>
    %610 = vector.broadcast %609 : vector<8x1xi1> to vector<8x32xi1>
    %611 = arith.select %610, %605, %553 : vector<8x32xi1>, vector<8x32xf32>
    %cst_104 = arith.constant 5.000000e-01 : f32
    %612 = vector.shape_cast %24 : vector<8x1xi1> to vector<8x1xi1>
    %613 = vector.broadcast %612 : vector<8x1xi1> to vector<8x32xi1>
    %614 = vector.broadcast %cst_104 : f32 to vector<8x32xf32>
    %615 = arith.select %613, %611, %614 : vector<8x32xi1>, vector<8x32xf32>
    %c72_105 = arith.constant 72 : index
    %c0_106 = arith.constant 0 : index
    %616 = vector.load %arg14[%c72_105, %c0_106] : memref<80x32xf32, #tpu.memory_space<vmem>>, vector<8x32xf32>
    tpu.vector_store %arg14[%c72_105, %c0_106], %615 {strides = array<i32>} : memref<80x32xf32, #tpu.memory_space<vmem>>, vector<8x32xf32>,
    %c0_107 = arith.constant 0 : index
    %c0_108 = arith.constant 0 : index
    %617 = vector.load %arg12[%c0_107, %c0_108] : memref<32x32xf32, #tpu.memory_space<vmem>>, vector<8x32xf32>
    tpu.vector_store %arg12[%c0_107, %c0_108], %585 {strides = array<i32>} : memref<32x32xf32, #tpu.memory_space<vmem>>, vector<8x32xf32>,
    %c16_109 = arith.constant 16 : index
    %c0_110 = arith.constant 0 : index
    %618 = vector.load %arg12[%c16_109, %c0_110] : memref<32x32xf32, #tpu.memory_space<vmem>>, vector<8x32xf32>
    tpu.vector_store %arg12[%c16_109, %c0_110], %582 {strides = array<i32>} : memref<32x32xf32, #tpu.memory_space<vmem>>, vector<8x32xf32>,
    %c8_111 = arith.constant 8 : index
    %c0_112 = arith.constant 0 : index
    %619 = vector.load %arg12[%c8_111, %c0_112] : memref<32x32xf32, #tpu.memory_space<vmem>>, vector<8x32xf32>
    tpu.vector_store %arg12[%c8_111, %c0_112], %611 {strides = array<i32>} : memref<32x32xf32, #tpu.memory_space<vmem>>, vector<8x32xf32>,
    %c24_113 = arith.constant 24 : index
    %c0_114 = arith.constant 0 : index
    %620 = vector.load %arg12[%c24_113, %c0_114] : memref<32x32xf32, #tpu.memory_space<vmem>>, vector<8x32xf32>
    tpu.vector_store %arg12[%c24_113, %c0_114], %608 {strides = array<i32>} : memref<32x32xf32, #tpu.memory_space<vmem>>, vector<8x32xf32>,
    %c0_115 = arith.constant 0 : index
    %c0_116 = arith.constant 0 : index
    %621 = vector.load %arg14[%c0_115, %c0_116] : memref<80x32xf32, #tpu.memory_space<vmem>>, vector<80x32xf32>
    %622 = arith.truncf %621 : vector<80x32xf32> to vector<80x32xbf16>
    %c0_117 = arith.constant 0 : index
    %c0_118 = arith.constant 0 : index
    %623 = vector.load %arg9[%c0_117, %c0_118] : memref<32x8xbf16, #tpu.memory_space<vmem>>, vector<32x8xbf16>
    %cst_119 = arith.constant dense<0.000000e+00> : vector<80x8xf32>
    %624 = tpu.matmul %622, %623, %cst_119 {dimension_numbers = #tpu.dot_dimension_numbers<[1], [0], [0], [1], [0, 0, 1, 1], [], []>} : vector<80x32xbf16>, vector<32x8xbf16>, vector<80x8xf32> -> vector<80x8xf32>
    %c0_120 = arith.constant 0 : index
    %c0_121 = arith.constant 0 : index
    %625 = vector.load %arg10[%c0_120, %c0_121] : memref<1x8xf32, #tpu.memory_space<vmem>>, vector<1x8xf32>
    %626 = vector.broadcast %625 : vector<1x8xf32> to vector<80x8xf32>
    %627 = arith.addf %624, %626 : vector<80x8xf32>
    %c0_122 = arith.constant 0 : index
    %c0_123 = arith.constant 0 : index
    %628 = vector.load %arg11[%c0_122, %c0_123] : memref<80x8xf32, #tpu.memory_space<vmem>>, vector<80x8xf32>
    tpu.vector_store %arg11[%c0_122, %c0_123], %627 {strides = array<i32>} : memref<80x8xf32, #tpu.memory_space<vmem>>, vector<80x8xf32>,
    return
  }
}

</mosaic_0001>

<llo_original>
// kernel: tpu_custom_call.1
$region0: #{tpu_custom_call.1}
  #allocation0 [shape = 'u32[]', space=smem, size = 0x4, offset = 0x4, fixed_abs, tag = 'smem constant byte address 0x4 - core index']
  #allocation1 [shape = 'u32[72,128]{1,0:T(1,128)}', space=vmem, size = 0x9000, scoped, tag = 'internal scratch']
  #allocation2 [shape = 'f32[80,128]{1,0:T(8,128)}', space=vmem, size = 0xa000, scoped, tag = 'scratch operand']
  #allocation3 [shape = 'f32[80,32]{1,0:T(8,128)}', space=vmem, size = 0xa000, scoped, tag = 'scratch operand']
  %s0 = inlined_call_operand.vmem [shape: bf16[80,8], index: 0, kind: input, shape index: {}]
  %s1 = inlined_call_operand.vmem [shape: s32[8,1], index: 1, kind: input, shape index: {}]
  %s2 = inlined_call_operand.vmem [shape: f32[2,8,32], index: 2, kind: input, shape index: {}]
  %s3 = inlined_call_operand.vmem [shape: f32[2,8,32], index: 3, kind: input, shape index: {}]
  %s4 = inlined_call_operand.vmem [shape: bf16[8,128], index: 4, kind: input, shape index: {}]
  %s5 = inlined_call_operand.hbm [shape: bf16[32,128], index: 5, kind: input, shape index: {}]
  %s6 = inlined_call_operand.vmem [shape: f32[1,128], index: 6, kind: input, shape index: {}]
  %s7 = inlined_call_operand.vmem [shape: bf16[64,128], index: 7, kind: input, shape index: {}]
  %s8 = inlined_call_operand.vmem [shape: f32[1,128], index: 8, kind: input, shape index: {}]
  %s9 = inlined_call_operand.vmem [shape: bf16[32,8], index: 9, kind: input, shape index: {}]
  %s10 = inlined_call_operand.vmem [shape: f32[1,8], index: 10, kind: input, shape index: {}]
  %s11 = inlined_call_operand.vmem [shape: f32[80,8], index: 11, kind: output, shape index: {0}]
  %s12 = inlined_call_operand.hbm [shape: f32[32,32], index: 12, kind: output, shape index: {1}]
  %13 = xla_tuple %s11, %s12
  %s14 = sld [smem:[#allocation0]]
  $region66: #{tpu_custom_call.1} parent=0
    _
  %s16 = ssub.s32 1, %s14
  %s17 = scalar_select 0, %s16, %s14
  $region1: #{tpu_custom_call.1} parent=0
    #allocation4 [shape = 'u8[8192]{0}', space=vmem, size = 0x2000, scoped, tag = 'input window, operand 5, single buffered']
    #allocation5 [shape = 's32[1]{0}', space=sflag, size = 0x4, scoped, tag = 'scoped memory for tpu_custom_call.1']
    #allocation6 [shape = 's32[1]{0}', space=sflag, size = 0x4, scoped, tag = 'scoped memory for tpu_custom_call.1']
    #allocation7 [shape = 'u8[16384]{0}', space=vmem, size = 0x4000, scoped, tag = 'output window, operand 1, single buffered']
    %18 = vsyncpa [#allocation5], 0
    %19 = vsyncpa [#allocation6], 0
    // Predicated region
    $region2: #{tpu_custom_call.1} parent=1 // pred_check
      _
    $region3: #{tpu_custom_call.1} parent=1 // pred_check_branch
      %21 = sbr.rel (0) target = $region5
    $region4: #{tpu_custom_call.1} parent=1 // pred_region
      _
    $region5: #{tpu_custom_call.1} parent=1 // pred_fallthru
      _
    // Predicated region
    $region6: #{tpu_custom_call.1} parent=1 // pred_check
      _
    $region7: #{tpu_custom_call.1} parent=1 // pred_check_branch
      %23 = sbr.rel (0) target = $region9
    $region8: #{tpu_custom_call.1} parent=1 // pred_region
      _
    $region9: #{tpu_custom_call.1} parent=1 // pred_fallthru
      _
    // Predicated region
    $region10: #{tpu_custom_call.1} parent=1 // pred_check
      _
    $region11: #{tpu_custom_call.1} parent=1 // pred_check_branch
      %25 = sbr.rel (0) target = $region13
    $region12: #{tpu_custom_call.1} parent=1 // pred_region
      _
    $region13: #{tpu_custom_call.1} parent=1 // pred_fallthru
      _
    // Predicated region
    $region14: #{tpu_custom_call.1} parent=1 // pred_check
      _
    $region15: #{tpu_custom_call.1} parent=1 // pred_check_branch
      %27 = sbr.rel (0) target = $region17
    $region16: #{tpu_custom_call.1} parent=1 // pred_region
      _
    $region17: #{tpu_custom_call.1} parent=1 // pred_fallthru
      _
    // Predicated region
    $region18: #{tpu_custom_call.1} parent=1 // pred_check
      _
    $region19: #{tpu_custom_call.1} parent=1 // pred_check_branch
      %29 = sbr.rel (0) target = $region21
    $region20: #{tpu_custom_call.1} parent=1 // pred_region
      _
    $region21: #{tpu_custom_call.1} parent=1 // pred_fallthru
      _
    // Predicated region
    $region22: #{tpu_custom_call.1} parent=1 // pred_check
      _
    $region23: #{tpu_custom_call.1} parent=1 // pred_check_branch
      %31 = sbr.rel (0) target = $region25
    $region24: #{tpu_custom_call.1} parent=1 // pred_region
      %33 = vsyncadd [#allocation5], 0
      %s34 = sshll.u32 %s5, 4
      %s35 = int_to_ptr.hbm [resolvable:$true] %s34
      %s36 = sshll.u32 [#allocation4], 4
      %s37 = int_to_ptr.vmem [resolvable:$true] %s36
      %42 = dma.hbm_to_vmem [thread:$0]  %s35, 256, %s37, [#allocation5], 64, 64, 4
    $region25: #{tpu_custom_call.1} parent=1 // pred_fallthru
      _
    // Predicated region
    $region26: #{tpu_custom_call.1} parent=1 // pred_check
      _
    $region27: #{tpu_custom_call.1} parent=1 // pred_check_branch
      %44 = sbr.rel (0) target = $region29
    $region28: #{tpu_custom_call.1} parent=1 // pred_region
      _
    $region29: #{tpu_custom_call.1} parent=1 // pred_fallthru
      _
    // Predicated region
    $region30: #{tpu_custom_call.1} parent=1 // pred_check
      _
    $region31: #{tpu_custom_call.1} parent=1 // pred_check_branch
      %46 = sbr.rel (0) target = $region33
    $region32: #{tpu_custom_call.1} parent=1 // pred_region
      _
    $region33: #{tpu_custom_call.1} parent=1 // pred_fallthru
      _
    // Predicated region
    $region34: #{tpu_custom_call.1} parent=1 // pred_check
      _
    $region35: #{tpu_custom_call.1} parent=1 // pred_check_branch
      %48 = sbr.rel (0) target = $region37
    $region36: #{tpu_custom_call.1} parent=1 // pred_region
      _
    $region37: #{tpu_custom_call.1} parent=1 // pred_fallthru
      _
    // Predicated region
    $region38: #{tpu_custom_call.1} parent=1 // pred_check
      _
    $region39: #{tpu_custom_call.1} parent=1 // pred_check_branch
      %50 = sbr.rel (0) target = $region41
    $region40: #{tpu_custom_call.1} parent=1 // pred_region
      _
    $region41: #{tpu_custom_call.1} parent=1 // pred_fallthru
      _
    // Predicated region
    $region42: #{tpu_custom_call.1} parent=1 // pred_check
      _
    $region43: #{tpu_custom_call.1} parent=1 // pred_check_branch
      %52 = sbr.rel (0) target = $region45
    $region44: #{tpu_custom_call.1} parent=1 // pred_region
      _
    $region45: #{tpu_custom_call.1} parent=1 // pred_fallthru
      _
    // Predicated region
    $region46: #{tpu_custom_call.1} parent=1 // pred_check
      _
    $region47: #{tpu_custom_call.1} parent=1 // pred_check_branch
      %54 = sbr.rel (0) target = $region49
    $region48: #{tpu_custom_call.1} parent=1 // pred_region
      %56 = dma.done [#allocation5], 256
    $region49: #{tpu_custom_call.1} parent=1 // pred_fallthru
      _
    %v58 = vld [vmem:[%s1] sm:$0xff]
    %v59 = vld [vmem:[#allocation4] sm:$0xf]
    %v60 = vld [vmem:[#allocation4 + $0x4] sm:$0xf]
    %v61 = vld [vmem:[#allocation4 + $0x8] sm:$0xf]
    %v62 = vld [vmem:[#allocation4 + $0xc] sm:$0xf]
    %v63 = vld [vmem:[%s6] sm:$0x1]
    %v64 = vld [vmem:[%s7] sm:$0xf]
    %v65 = vld [vmem:[%s7 + $0x4] sm:$0xf]
    %v66 = vld [vmem:[%s7 + $0x8] sm:$0xf]
    %v67 = vld [vmem:[%s7 + $0xc] sm:$0xf]
    %v68 = vld [vmem:[%s7 + $0x10] sm:$0xf]
    %v69 = vld [vmem:[%s7 + $0x14] sm:$0xf]
    %v70 = vld [vmem:[%s7 + $0x18] sm:$0xf]
    %v71 = vld [vmem:[%s7 + $0x1c] sm:$0xf]
    %v72 = vld [vmem:[%s8] sm:$0x1]
    %vm73 = vcmp.gt.s32.totalorder %v58, 0
    %vm74 = vcmp.gt.s32.totalorder %v58, 1
    %vm75 = vcmp.gt.s32.totalorder %v58, 2
    %vm76 = vcmp.gt.s32.totalorder %v58, 3
    %vm77 = vcmp.gt.s32.totalorder %v58, 4
    %vm78 = vcmp.gt.s32.totalorder %v58, 5
    %vm79 = vcmp.gt.s32.totalorder %v58, 6
    %vm80 = vcmp.gt.s32.totalorder %v58, 7
    %vm81 = vcmp.gt.s32.totalorder %v58, 8
    %vm82 = vcmp.gt.s32.totalorder %v58, 9
    %v83 = vld [vmem:[%s0] sm:$0xf]
    %v84 = vld [vmem:[%s0 + $0x4] sm:$0xf]
    %v85 = vld [vmem:[%s0 + $0x8] sm:$0xf]
    %v86 = vld [vmem:[%s0 + $0xc] sm:$0xf]
    %v87 = vld [vmem:[%s0 + $0x10] sm:$0xf]
    %v88 = vld [vmem:[%s0 + $0x14] sm:$0xf]
    %v89 = vld [vmem:[%s0 + $0x18] sm:$0xf]
    %v90 = vld [vmem:[%s0 + $0x1c] sm:$0xf]
    %v91 = vld [vmem:[%s0 + $0x20] sm:$0xf]
    %v92 = vld [vmem:[%s0 + $0x24] sm:$0xf]
    %v93 = vld [vmem:[%s4] sm:$0xf]
    %v104 = vunpack.c.l.b16 %v83
    %v105 = vunpack.c.l.b16 %v84
    %v106 = vunpack.c.l.b16 %v85
    %v107 = vunpack.c.l.b16 %v86
    %v108 = vunpack.c.l.b16 %v87
    %v109 = vunpack.c.l.b16 %v88
    %v110 = vunpack.c.l.b16 %v89
    %v111 = vunpack.c.l.b16 %v90
    %v112 = vunpack.c.l.b16 %v91
    %v113 = vunpack.c.l.b16 %v92
    %v114 = vpack.c.b16 %v105, %v104
    %v115 = vpack.c.b16 %v107, %v106
    %v116 = vpack.c.b16 %v109, %v108
    %v117 = vpack.c.b16 %v111, %v110
    %v118 = vpack.c.b16 %v113, %v112
    %vm119 = vcmask 64512
    %v121 = vsel %vm119, %v114, 0
    %v124 = vsel %vm119, %v115, 0
    %v127 = vsel %vm119, %v116, 0
    %v130 = vsel %vm119, %v117, 0
    %v133 = vsel %vm119, %v118, 0
    %vm135 = vcmask 1043456
    %v137 = vsel %vm135, %v93, 0
    %139 = vmatpush.bf16.msra.mxu0 0
    %140 = vmatpush.bf16.msra.mxu0 0
    %141 = vmatpush.bf16.msra.mxu0 0
    %142 = vmatpush.bf16.msra.mxu0 0
    %143 = vmatpush.bf16.msra.mxu0 0
    %144 = vmatpush.bf16.msra.mxu0 0
    %145 = vmatpush.bf16.msra.mxu0 0
    %146 = vmatpush.bf16.msra.mxu0 %v137
    %147 = vmatmul.bf16.gmra.mxu0 %v121
    %v148 = vpop.f32.mrf.mxu0
    %v149 = vadd.f32 0.0, %v148
    %v150 = vpop.f32.mrf.mxu0
    %v151 = vadd.f32 0.0, %v150
    %152 = vmatmul.bf16.gmra.mxu0 %v124
    %v153 = vpop.f32.mrf.mxu0
    %v154 = vadd.f32 0.0, %v153
    %v155 = vpop.f32.mrf.mxu0
    %v156 = vadd.f32 0.0, %v155
    %157 = vmatmul.bf16.gmra.mxu0 %v127
    %v158 = vpop.f32.mrf.mxu0
    %v159 = vadd.f32 0.0, %v158
    %v160 = vpop.f32.mrf.mxu0
    %v161 = vadd.f32 0.0, %v160
    %162 = vmatmul.bf16.gmra.mxu0 %v130
    %v163 = vpop.f32.mrf.mxu0
    %v164 = vadd.f32 0.0, %v163
    %v165 = vpop.f32.mrf.mxu0
    %v166 = vadd.f32 0.0, %v165
    %167 = vmatmul.bf16.gmra.mxu0 %v133
    %v168 = vpop.f32.mrf.mxu0
    %v169 = vadd.f32 0.0, %v168
    %v170 = vpop.f32.mrf.mxu0
    %v171 = vadd.f32 0.0, %v170
    %172 = vdwg.mxu0
    %173 = vst [vmem:[#allocation2] sm:$0xff] %v149
    %174 = vst [vmem:[#allocation2 + $0x8] sm:$0xff] %v151
    %175 = vst [vmem:[#allocation2 + $0x10] sm:$0xff] %v154
    %176 = vst [vmem:[#allocation2 + $0x18] sm:$0xff] %v156
    %177 = vst [vmem:[#allocation2 + $0x20] sm:$0xff] %v159
    %178 = vst [vmem:[#allocation2 + $0x28] sm:$0xff] %v161
    %179 = vst [vmem:[#allocation2 + $0x30] sm:$0xff] %v164
    %180 = vst [vmem:[#allocation2 + $0x38] sm:$0xff] %v166
    %181 = vst [vmem:[#allocation2 + $0x40] sm:$0xff] %v169
    %182 = vst [vmem:[#allocation2 + $0x48] sm:$0xff] %v171
    %v183 = vld [vmem:[%s2] sm:$0xff]
    %s184 = scalar_lea.vmem %s2, 8
    %v185 = vld [vmem:[%s184] sm:$0xff]
    %v186 = vld [vmem:[%s3] sm:$0xff]
    %s187 = scalar_lea.vmem %s3, 8
    %v188 = vld [vmem:[%s187] sm:$0xff]
    %v189 = vld [vmem:[#allocation2] sm:$0xff]
    %v190 = vpack.c.bf16 %v183, %v183
    %v195 = vunpack.c.l.b16 %v59
    %v196 = vunpack.c.l.b16 %v60
    %v197 = vunpack.c.l.b16 %v61
    %v198 = vunpack.c.l.b16 %v62
    %v199 = vpack.c.b16 %v196, %v195
    %v200 = vpack.c.b16 %v198, %v197
    %vm203 = vcmask 261120
    %v205 = vsel %vm203, %v190, 0
    %207 = vmatpush.bf16.msra.mxu0 0
    %208 = vmatpush.bf16.msra.mxu0 0
    %209 = vmatpush.bf16.msra.mxu0 0
    %210 = vmatpush.bf16.msra.mxu0 0
    %211 = vmatpush.bf16.msra.mxu0 0
    %212 = vmatpush.bf16.msra.mxu0 0
    %213 = vmatpush.bf16.msra.mxu0 %v200
    %214 = vmatpush.bf16.msra.mxu0 %v199
    %215 = vmatmul.bf16.gmra.mxu0 %v205
    %v216 = vpop.f32.mrf.mxu0
    %v217 = vadd.f32 0.0, %v216
    %v218 = vpop.f32.mrf.mxu0
    %219 = vdwg.mxu0
    %v220 = vadd.f32 %v189, %v217
    %v222 = vperm.slane %v63, 0
    %v224 = vadd.f32 %v220, %v222
    %v225 = vxor.u32 %v224, 2147483648
    %v226 = vmul.f32 %v225, 1.442695
    %v227 = vpow.pop %v226
    %v228 = vadd.f32 %v227, 1.0
    %v229 = vrcp.pop %v228
    %v230 = vmul.f32 %v228, %v229
    %v231 = vsub.f32 1.0, %v230
    %v232 = vmul.f32 %v229, %v231
    %v233 = vadd.f32 %v229, %v232
    %vm234 = vweird.f32 %v228
    %vm235 = vweird.f32 %v229
    %vm236 = vmor %vm234, %vm235
    %v237 = vsel %vm236, %v229, %v233
    %v238 = vand.u32 2147483647, %v228
    %vm239 = vcmp.eq.f32.partialorder %v238, 8.507059e+37
    %v240 = vand.u32 %v228, 2147483648
    %v241 = vor.u32 1.1754944e-38, %v240
    %v242 = vsel %vm239, %v241, %v237
    %v243 = vmul.f32 1.0, %v242
    %v244 = vtanh.pop %v224
    %246 = vrot.lane.b32.xlu0 %v186, 32
    %v247 = vpop.permute.xlu0 %246
    %v249 = vmul.f32 %v243, %v247
    %251 = vrot.lane.b32.xlu0 %v244, 64
    %v252 = vpop.permute.xlu0 %251
    %v254 = vmul.f32 %v243, %v252
    %256 = vrot.lane.b32.xlu0 %v254, 32
    %v257 = vpop.permute.xlu0 %256
    %v259 = vadd.f32 %v249, %v257
    %v260 = vtanh.pop %v259
    %262 = vrot.lane.b32.xlu0 %v260, 64
    %v263 = vpop.permute.xlu0 %262
    %v265 = vmul.f32 %v243, %v263
    %v266 = vsel %vm73, 1, 0
    %267 = vset.pattern.permute.xlu0 0
    %268 = vperm.xlu0 %267, %v266
    %v269 = vpop.permute.xlu0 %268
    %vm270 = vcmp.eq.s32.totalorder %v269, 1
    %v271 = vsel %vm270, %v259, %v247
    %273 = vrot.lane.b32.xlu0 %v183, 96
    %v274 = vpop.permute.xlu0 %273
    %v276 = vsel %vm270, %v265, %v274
    %278 = vrot.lane.b32.xlu0 %v276, 32
    %v279 = vpop.permute.xlu0 %278
    %282 = vrot.lane.b32.xlu0 %v185, 32
    %v283 = vpop.permute.xlu0 %282
    %v285 = vsel %vm203, %v279, %v283
    %v286 = vpack.c.bf16 %v285, %v285
    %v288 = vperm.slane %v72, 0
    %v298 = vunpack.c.l.b16 %v64
    %v299 = vunpack.c.l.b16 %v65
    %v300 = vunpack.c.l.b16 %v66
    %v301 = vunpack.c.l.b16 %v67
    %v302 = vunpack.c.l.b16 %v68
    %v303 = vunpack.c.l.b16 %v69
    %v304 = vunpack.c.l.b16 %v70
    %v305 = vunpack.c.l.b16 %v71
    %v306 = vpack.c.b16 %v299, %v298
    %v307 = vpack.c.b16 %v301, %v300
    %v308 = vpack.c.b16 %v303, %v302
    %v309 = vpack.c.b16 %v305, %v304
    %vm314 = vcmask 523264
    %v316 = vsel %vm314, %v286, 0
    %318 = vmatpush.bf16.msra.mxu0 0
    %319 = vmatpush.bf16.msra.mxu0 0
    %320 = vmatpush.bf16.msra.mxu0 0
    %321 = vmatpush.bf16.msra.mxu0 0
    %322 = vmatpush.bf16.msra.mxu0 %v309
    %323 = vmatpush.bf16.msra.mxu0 %v308
    %324 = vmatpush.bf16.msra.mxu0 %v307
    %325 = vmatpush.bf16.msra.mxu0 %v306
    %326 = vmatmul.bf16.gmra.mxu0 %v316
    %v327 = vpop.f32.mrf.mxu0
    %v328 = vadd.f32 %v288, %v327
    %v329 = vpop.f32.mrf.mxu0
    %330 = vdwg.mxu0
    %v331 = vxor.u32 %v328, 2147483648
    %v332 = vmul.f32 %v331, 1.442695
    %v333 = vpow.pop %v332
    %v334 = vadd.f32 %v333, 1.0
    %v335 = vrcp.pop %v334
    %v336 = vmul.f32 %v334, %v335
    %v337 = vsub.f32 1.0, %v336
    %v338 = vmul.f32 %v335, %v337
    %v339 = vadd.f32 %v335, %v338
    %vm340 = vweird.f32 %v334
    %vm341 = vweird.f32 %v335
    %vm342 = vmor %vm340, %vm341
    %v343 = vsel %vm342, %v335, %v339
    %v344 = vand.u32 2147483647, %v334
    %vm345 = vcmp.eq.f32.partialorder %v344, 8.507059e+37
    %v346 = vand.u32 %v334, 2147483648
    %v347 = vor.u32 1.1754944e-38, %v346
    %v348 = vsel %vm345, %v347, %v343
    %v349 = vmul.f32 1.0, %v348
    %v350 = vtanh.pop %v328
    %352 = vrot.lane.b32.xlu0 %v188, 32
    %v353 = vpop.permute.xlu0 %352
    %v355 = vmul.f32 %v349, %v353
    %357 = vrot.lane.b32.xlu0 %v350, 64
    %v358 = vpop.permute.xlu0 %357
    %v360 = vmul.f32 %v349, %v358
    %362 = vrot.lane.b32.xlu0 %v360, 32
    %v363 = vpop.permute.xlu0 %362
    %v365 = vadd.f32 %v355, %v363
    %v366 = vtanh.pop %v365
    %368 = vrot.lane.b32.xlu0 %v366, 64
    %v369 = vpop.permute.xlu0 %368
    %v371 = vmul.f32 %v349, %v369
    %v372 = vsel %vm270, %v365, %v353
    %373 = vrot.lane.b32.xlu0 %v185, 96
    %v374 = vpop.permute.xlu0 %373
    %v376 = vsel %vm270, %v371, %v374
    %v377 = vsel %vm270, %v371, 0.5
    %379 = vrot.lane.b32.xlu0 %v377, 32
    %v380 = vpop.permute.xlu0 %379
    %382 = vst.msk [vmem:[#allocation3] sm:$0xff] %vm203, %v380
    %v383 = vld [vmem:[#allocation2 + $0x8] sm:$0xff]
    %v384 = vpack.c.bf16 %v276, %v276
    %386 = vrot.lane.b32.xlu0 %v384, 32
    %v387 = vpop.permute.xlu0 %386
    %v389 = vsel %vm203, %v387, 0
    %391 = vmatpush.bf16.msra.mxu0 0
    %392 = vmatpush.bf16.msra.mxu0 0
    %393 = vmatpush.bf16.msra.mxu0 0
    %394 = vmatpush.bf16.msra.mxu0 0
    %395 = vmatpush.bf16.msra.mxu0 0
    %396 = vmatpush.bf16.msra.mxu0 0
    %397 = vmatpush.bf16.msra.mxu0 %v200
    %398 = vmatpush.bf16.msra.mxu0 %v199
    %399 = vmatmul.bf16.gmra.mxu0 %v389
    %v400 = vpop.f32.mrf.mxu0
    %v401 = vadd.f32 0.0, %v400
    %v402 = vpop.f32.mrf.mxu0
    %403 = vdwg.mxu0
    %v404 = vadd.f32 %v383, %v401
    %v405 = vadd.f32 %v404, %v222
    %v406 = vxor.u32 %v405, 2147483648
    %v407 = vmul.f32 %v406, 1.442695
    %v408 = vpow.pop %v407
    %v409 = vadd.f32 %v408, 1.0
    %v410 = vrcp.pop %v409
    %v411 = vmul.f32 %v409, %v410
    %v412 = vsub.f32 1.0, %v411
    %v413 = vmul.f32 %v410, %v412
    %v414 = vadd.f32 %v410, %v413
    %vm415 = vweird.f32 %v409
    %vm416 = vweird.f32 %v410
    %vm417 = vmor %vm415, %vm416
    %v418 = vsel %vm417, %v410, %v414
    %v419 = vand.u32 2147483647, %v409
    %vm420 = vcmp.eq.f32.partialorder %v419, 8.507059e+37
    %v421 = vand.u32 %v409, 2147483648
    %v422 = vor.u32 1.1754944e-38, %v421
    %v423 = vsel %vm420, %v422, %v418
    %v424 = vmul.f32 1.0, %v423
    %v425 = vtanh.pop %v405
    %v426 = vmul.f32 %v424, %v271
    %428 = vrot.lane.b32.xlu0 %v425, 64
    %v429 = vpop.permute.xlu0 %428
    %v431 = vmul.f32 %v424, %v429
    %433 = vrot.lane.b32.xlu0 %v431, 32
    %v434 = vpop.permute.xlu0 %433
    %v436 = vadd.f32 %v426, %v434
    %v437 = vtanh.pop %v436
    %439 = vrot.lane.b32.xlu0 %v437, 64
    %v440 = vpop.permute.xlu0 %439
    %v442 = vmul.f32 %v424, %v440
    %v443 = vsel %vm74, 1, 0
    %444 = vset.pattern.permute.xlu0 0
    %445 = vperm.xlu0 %444, %v443
    %v446 = vpop.permute.xlu0 %445
    %vm447 = vcmp.eq.s32.totalorder %v446, 1
    %v448 = vsel %vm447, %v436, %v271
    %v449 = vsel %vm447, %v442, %v276
    %451 = vrot.lane.b32.xlu0 %v449, 32
    %v452 = vpop.permute.xlu0 %451
    %455 = vrot.lane.b32.xlu0 %v376, 64
    %v456 = vpop.permute.xlu0 %455
    %v458 = vsel %vm203, %v452, %v456
    %v459 = vpack.c.bf16 %v458, %v458
    %v461 = vsel %vm314, %v459, 0
    %463 = vmatpush.bf16.msra.mxu0 0
    %464 = vmatpush.bf16.msra.mxu0 0
    %465 = vmatpush.bf16.msra.mxu0 0
    %466 = vmatpush.bf16.msra.mxu0 0
    %467 = vmatpush.bf16.msra.mxu0 %v309
    %468 = vmatpush.bf16.msra.mxu0 %v308
    %469 = vmatpush.bf16.msra.mxu0 %v307
    %470 = vmatpush.bf16.msra.mxu0 %v306
    %471 = vmatmul.bf16.gmra.mxu0 %v461
    %v472 = vpop.f32.mrf.mxu0
    %v473 = vadd.f32 %v288, %v472
    %v474 = vpop.f32.mrf.mxu0
    %475 = vdwg.mxu0
    %v476 = vxor.u32 %v473, 2147483648
    %v477 = vmul.f32 %v476, 1.442695
    %v478 = vpow.pop %v477
    %v479 = vadd.f32 %v478, 1.0
    %v480 = vrcp.pop %v479
    %v481 = vmul.f32 %v479, %v480
    %v482 = vsub.f32 1.0, %v481
    %v483 = vmul.f32 %v480, %v482
    %v484 = vadd.f32 %v480, %v483
    %vm485 = vweird.f32 %v479
    %vm486 = vweird.f32 %v480
    %vm487 = vmor %vm485, %vm486
    %v488 = vsel %vm487, %v480, %v484
    %v489 = vand.u32 2147483647, %v479
    %vm490 = vcmp.eq.f32.partialorder %v489, 8.507059e+37
    %v491 = vand.u32 %v479, 2147483648
    %v492 = vor.u32 1.1754944e-38, %v491
    %v493 = vsel %vm490, %v492, %v488
    %v494 = vmul.f32 1.0, %v493
    %v495 = vtanh.pop %v473
    %v496 = vmul.f32 %v494, %v372
    %498 = vrot.lane.b32.xlu0 %v495, 64
    %v499 = vpop.permute.xlu0 %498
    %v501 = vmul.f32 %v494, %v499
    %503 = vrot.lane.b32.xlu0 %v501, 32
    %v504 = vpop.permute.xlu0 %503
    %v506 = vadd.f32 %v496, %v504
    %v507 = vtanh.pop %v506
    %509 = vrot.lane.b32.xlu0 %v507, 64
    %v510 = vpop.permute.xlu0 %509
    %v512 = vmul.f32 %v494, %v510
    %v513 = vsel %vm447, %v506, %v372
    %v514 = vsel %vm447, %v512, %v376
    %v515 = vsel %vm447, %v512, 0.5
    %517 = vrot.lane.b32.xlu0 %v515, 32
    %v518 = vpop.permute.xlu0 %517
    %520 = vst.msk [vmem:[#allocation3 + $0x8] sm:$0xff] %vm203, %v518
    %v521 = vld [vmem:[#allocation2 + $0x10] sm:$0xff]
    %v522 = vpack.c.bf16 %v449, %v449
    %524 = vrot.lane.b32.xlu0 %v522, 32
    %v525 = vpop.permute.xlu0 %524
    %v527 = vsel %vm203, %v525, 0
    %529 = vmatpush.bf16.msra.mxu0 0
    %530 = vmatpush.bf16.msra.mxu0 0
    %531 = vmatpush.bf16.msra.mxu0 0
    %532 = vmatpush.bf16.msra.mxu0 0
    %533 = vmatpush.bf16.msra.mxu0 0
    %534 = vmatpush.bf16.msra.mxu0 0
    %535 = vmatpush.bf16.msra.mxu0 %v200
    %536 = vmatpush.bf16.msra.mxu0 %v199
    %537 = vmatmul.bf16.gmra.mxu0 %v527
    %v538 = vpop.f32.mrf.mxu0
    %v539 = vadd.f32 0.0, %v538
    %v540 = vpop.f32.mrf.mxu0
    %541 = vdwg.mxu0
    %v542 = vadd.f32 %v521, %v539
    %v543 = vadd.f32 %v542, %v222
    %v544 = vxor.u32 %v543, 2147483648
    %v545 = vmul.f32 %v544, 1.442695
    %v546 = vpow.pop %v545
    %v547 = vadd.f32 %v546, 1.0
    %v548 = vrcp.pop %v547
    %v549 = vmul.f32 %v547, %v548
    %v550 = vsub.f32 1.0, %v549
    %v551 = vmul.f32 %v548, %v550
    %v552 = vadd.f32 %v548, %v551
    %vm553 = vweird.f32 %v547
    %vm554 = vweird.f32 %v548
    %vm555 = vmor %vm553, %vm554
    %v556 = vsel %vm555, %v548, %v552
    %v557 = vand.u32 2147483647, %v547
    %vm558 = vcmp.eq.f32.partialorder %v557, 8.507059e+37
    %v559 = vand.u32 %v547, 2147483648
    %v560 = vor.u32 1.1754944e-38, %v559
    %v561 = vsel %vm558, %v560, %v556
    %v562 = vmul.f32 1.0, %v561
    %v563 = vtanh.pop %v543
    %v564 = vmul.f32 %v562, %v448
    %566 = vrot.lane.b32.xlu0 %v563, 64
    %v567 = vpop.permute.xlu0 %566
    %v569 = vmul.f32 %v562, %v567
    %571 = vrot.lane.b32.xlu0 %v569, 32
    %v572 = vpop.permute.xlu0 %571
    %v574 = vadd.f32 %v564, %v572
    %v575 = vtanh.pop %v574
    %577 = vrot.lane.b32.xlu0 %v575, 64
    %v578 = vpop.permute.xlu0 %577
    %v580 = vmul.f32 %v562, %v578
    %v581 = vsel %vm75, 1, 0
    %582 = vset.pattern.permute.xlu0 0
    %583 = vperm.xlu0 %582, %v581
    %v584 = vpop.permute.xlu0 %583
    %vm585 = vcmp.eq.s32.totalorder %v584, 1
    %v586 = vsel %vm585, %v574, %v448
    %v587 = vsel %vm585, %v580, %v449
    %589 = vrot.lane.b32.xlu0 %v587, 32
    %v590 = vpop.permute.xlu0 %589
    %593 = vrot.lane.b32.xlu0 %v514, 64
    %v594 = vpop.permute.xlu0 %593
    %v596 = vsel %vm203, %v590, %v594
    %v597 = vpack.c.bf16 %v596, %v596
    %v599 = vsel %vm314, %v597, 0
    %601 = vmatpush.bf16.msra.mxu0 0
    %602 = vmatpush.bf16.msra.mxu0 0
    %603 = vmatpush.bf16.msra.mxu0 0
    %604 = vmatpush.bf16.msra.mxu0 0
    %605 = vmatpush.bf16.msra.mxu0 %v309
    %606 = vmatpush.bf16.msra.mxu0 %v308
    %607 = vmatpush.bf16.msra.mxu0 %v307
    %608 = vmatpush.bf16.msra.mxu0 %v306
    %609 = vmatmul.bf16.gmra.mxu0 %v599
    %v610 = vpop.f32.mrf.mxu0
    %v611 = vadd.f32 %v288, %v610
    %v612 = vpop.f32.mrf.mxu0
    %613 = vdwg.mxu0
    %v614 = vxor.u32 %v611, 2147483648
    %v615 = vmul.f32 %v614, 1.442695
    %v616 = vpow.pop %v615
    %v617 = vadd.f32 %v616, 1.0
    %v618 = vrcp.pop %v617
    %v619 = vmul.f32 %v617, %v618
    %v620 = vsub.f32 1.0, %v619
    %v621 = vmul.f32 %v618, %v620
    %v622 = vadd.f32 %v618, %v621
    %vm623 = vweird.f32 %v617
    %vm624 = vweird.f32 %v618
    %vm625 = vmor %vm623, %vm624
    %v626 = vsel %vm625, %v618, %v622
    %v627 = vand.u32 2147483647, %v617
    %vm628 = vcmp.eq.f32.partialorder %v627, 8.507059e+37
    %v629 = vand.u32 %v617, 2147483648
    %v630 = vor.u32 1.1754944e-38, %v629
    %v631 = vsel %vm628, %v630, %v626
    %v632 = vmul.f32 1.0, %v631
    %v633 = vtanh.pop %v611
    %v634 = vmul.f32 %v632, %v513
    %636 = vrot.lane.b32.xlu0 %v633, 64
    %v637 = vpop.permute.xlu0 %636
    %v639 = vmul.f32 %v632, %v637
    %641 = vrot.lane.b32.xlu0 %v639, 32
    %v642 = vpop.permute.xlu0 %641
    %v644 = vadd.f32 %v634, %v642
    %v645 = vtanh.pop %v644
    %647 = vrot.lane.b32.xlu0 %v645, 64
    %v648 = vpop.permute.xlu0 %647
    %v650 = vmul.f32 %v632, %v648
    %v651 = vsel %vm585, %v644, %v513
    %v652 = vsel %vm585, %v650, %v514
    %v653 = vsel %vm585, %v650, 0.5
    %655 = vrot.lane.b32.xlu0 %v653, 32
    %v656 = vpop.permute.xlu0 %655
    %658 = vst.msk [vmem:[#allocation3 + $0x10] sm:$0xff] %vm203, %v656
    %v659 = vld [vmem:[#allocation2 + $0x18] sm:$0xff]
    %v660 = vpack.c.bf16 %v587, %v587
    %662 = vrot.lane.b32.xlu0 %v660, 32
    %v663 = vpop.permute.xlu0 %662
    %v665 = vsel %vm203, %v663, 0
    %667 = vmatpush.bf16.msra.mxu0 0
    %668 = vmatpush.bf16.msra.mxu0 0
    %669 = vmatpush.bf16.msra.mxu0 0
    %670 = vmatpush.bf16.msra.mxu0 0
    %671 = vmatpush.bf16.msra.mxu0 0
    %672 = vmatpush.bf16.msra.mxu0 0
    %673 = vmatpush.bf16.msra.mxu0 %v200
    %674 = vmatpush.bf16.msra.mxu0 %v199
    %675 = vmatmul.bf16.gmra.mxu0 %v665
    %v676 = vpop.f32.mrf.mxu0
    %v677 = vadd.f32 0.0, %v676
    %v678 = vpop.f32.mrf.mxu0
    %679 = vdwg.mxu0
    %v680 = vadd.f32 %v659, %v677
    %v681 = vadd.f32 %v680, %v222
    %v682 = vxor.u32 %v681, 2147483648
    %v683 = vmul.f32 %v682, 1.442695
    %v684 = vpow.pop %v683
    %v685 = vadd.f32 %v684, 1.0
    %v686 = vrcp.pop %v685
    %v687 = vmul.f32 %v685, %v686
    %v688 = vsub.f32 1.0, %v687
    %v689 = vmul.f32 %v686, %v688
    %v690 = vadd.f32 %v686, %v689
    %vm691 = vweird.f32 %v685
    %vm692 = vweird.f32 %v686
    %vm693 = vmor %vm691, %vm692
    %v694 = vsel %vm693, %v686, %v690
    %v695 = vand.u32 2147483647, %v685
    %vm696 = vcmp.eq.f32.partialorder %v695, 8.507059e+37
    %v697 = vand.u32 %v685, 2147483648
    %v698 = vor.u32 1.1754944e-38, %v697
    %v699 = vsel %vm696, %v698, %v694
    %v700 = vmul.f32 1.0, %v699
    %v701 = vtanh.pop %v681
    %v702 = vmul.f32 %v700, %v586
    %704 = vrot.lane.b32.xlu0 %v701, 64
    %v705 = vpop.permute.xlu0 %704
    %v707 = vmul.f32 %v700, %v705
    %709 = vrot.lane.b32.xlu0 %v707, 32
    %v710 = vpop.permute.xlu0 %709
    %v712 = vadd.f32 %v702, %v710
    %v713 = vtanh.pop %v712
    %715 = vrot.lane.b32.xlu0 %v713, 64
    %v716 = vpop.permute.xlu0 %715
    %v718 = vmul.f32 %v700, %v716
    %v719 = vsel %vm76, 1, 0
    %720 = vset.pattern.permute.xlu0 0
    %721 = vperm.xlu0 %720, %v719
    %v722 = vpop.permute.xlu0 %721
    %vm723 = vcmp.eq.s32.totalorder %v722, 1
    %v724 = vsel %vm723, %v712, %v586
    %v725 = vsel %vm723, %v718, %v587
    %727 = vrot.lane.b32.xlu0 %v725, 32
    %v728 = vpop.permute.xlu0 %727
    %731 = vrot.lane.b32.xlu0 %v652, 64
    %v732 = vpop.permute.xlu0 %731
    %v734 = vsel %vm203, %v728, %v732
    %v735 = vpack.c.bf16 %v734, %v734
    %v737 = vsel %vm314, %v735, 0
    %739 = vmatpush.bf16.msra.mxu0 0
    %740 = vmatpush.bf16.msra.mxu0 0
    %741 = vmatpush.bf16.msra.mxu0 0
    %742 = vmatpush.bf16.msra.mxu0 0
    %743 = vmatpush.bf16.msra.mxu0 %v309
    %744 = vmatpush.bf16.msra.mxu0 %v308
    %745 = vmatpush.bf16.msra.mxu0 %v307
    %746 = vmatpush.bf16.msra.mxu0 %v306
    %747 = vmatmul.bf16.gmra.mxu0 %v737
    %v748 = vpop.f32.mrf.mxu0
    %v749 = vadd.f32 %v288, %v748
    %v750 = vpop.f32.mrf.mxu0
    %751 = vdwg.mxu0
    %v752 = vxor.u32 %v749, 2147483648
    %v753 = vmul.f32 %v752, 1.442695
    %v754 = vpow.pop %v753
    %v755 = vadd.f32 %v754, 1.0
    %v756 = vrcp.pop %v755
    %v757 = vmul.f32 %v755, %v756
    %v758 = vsub.f32 1.0, %v757
    %v759 = vmul.f32 %v756, %v758
    %v760 = vadd.f32 %v756, %v759
    %vm761 = vweird.f32 %v755
    %vm762 = vweird.f32 %v756
    %vm763 = vmor %vm761, %vm762
    %v764 = vsel %vm763, %v756, %v760
    %v765 = vand.u32 2147483647, %v755
    %vm766 = vcmp.eq.f32.partialorder %v765, 8.507059e+37
    %v767 = vand.u32 %v755, 2147483648
    %v768 = vor.u32 1.1754944e-38, %v767
    %v769 = vsel %vm766, %v768, %v764
    %v770 = vmul.f32 1.0, %v769
    %v771 = vtanh.pop %v749
    %v772 = vmul.f32 %v770, %v651
    %774 = vrot.lane.b32.xlu0 %v771, 64
    %v775 = vpop.permute.xlu0 %774
    %v777 = vmul.f32 %v770, %v775
    %779 = vrot.lane.b32.xlu0 %v777, 32
    %v780 = vpop.permute.xlu0 %779
    %v782 = vadd.f32 %v772, %v780
    %v783 = vtanh.pop %v782
    %785 = vrot.lane.b32.xlu0 %v783, 64
    %v786 = vpop.permute.xlu0 %785
    %v788 = vmul.f32 %v770, %v786
    %v789 = vsel %vm723, %v782, %v651
    %v790 = vsel %vm723, %v788, %v652
    %v791 = vsel %vm723, %v788, 0.5
    %793 = vrot.lane.b32.xlu0 %v791, 32
    %v794 = vpop.permute.xlu0 %793
    %796 = vst.msk [vmem:[#allocation3 + $0x18] sm:$0xff] %vm203, %v794
    %v797 = vld [vmem:[#allocation2 + $0x20] sm:$0xff]
    %v798 = vpack.c.bf16 %v725, %v725
    %800 = vrot.lane.b32.xlu0 %v798, 32
    %v801 = vpop.permute.xlu0 %800
    %v803 = vsel %vm203, %v801, 0
    %805 = vmatpush.bf16.msra.mxu0 0
    %806 = vmatpush.bf16.msra.mxu0 0
    %807 = vmatpush.bf16.msra.mxu0 0
    %808 = vmatpush.bf16.msra.mxu0 0
    %809 = vmatpush.bf16.msra.mxu0 0
    %810 = vmatpush.bf16.msra.mxu0 0
    %811 = vmatpush.bf16.msra.mxu0 %v200
    %812 = vmatpush.bf16.msra.mxu0 %v199
    %813 = vmatmul.bf16.gmra.mxu0 %v803
    %v814 = vpop.f32.mrf.mxu0
    %v815 = vadd.f32 0.0, %v814
    %v816 = vpop.f32.mrf.mxu0
    %817 = vdwg.mxu0
    %v818 = vadd.f32 %v797, %v815
    %v819 = vadd.f32 %v818, %v222
    %v820 = vxor.u32 %v819, 2147483648
    %v821 = vmul.f32 %v820, 1.442695
    %v822 = vpow.pop %v821
    %v823 = vadd.f32 %v822, 1.0
    %v824 = vrcp.pop %v823
    %v825 = vmul.f32 %v823, %v824
    %v826 = vsub.f32 1.0, %v825
    %v827 = vmul.f32 %v824, %v826
    %v828 = vadd.f32 %v824, %v827
    %vm829 = vweird.f32 %v823
    %vm830 = vweird.f32 %v824
    %vm831 = vmor %vm829, %vm830
    %v832 = vsel %vm831, %v824, %v828
    %v833 = vand.u32 2147483647, %v823
    %vm834 = vcmp.eq.f32.partialorder %v833, 8.507059e+37
    %v835 = vand.u32 %v823, 2147483648
    %v836 = vor.u32 1.1754944e-38, %v835
    %v837 = vsel %vm834, %v836, %v832
    %v838 = vmul.f32 1.0, %v837
    %v839 = vtanh.pop %v819
    %v840 = vmul.f32 %v838, %v724
    %842 = vrot.lane.b32.xlu0 %v839, 64
    %v843 = vpop.permute.xlu0 %842
    %v845 = vmul.f32 %v838, %v843
    %847 = vrot.lane.b32.xlu0 %v845, 32
    %v848 = vpop.permute.xlu0 %847
    %v850 = vadd.f32 %v840, %v848
    %v851 = vtanh.pop %v850
    %853 = vrot.lane.b32.xlu0 %v851, 64
    %v854 = vpop.permute.xlu0 %853
    %v856 = vmul.f32 %v838, %v854
    %v857 = vsel %vm77, 1, 0
    %858 = vset.pattern.permute.xlu0 0
    %859 = vperm.xlu0 %858, %v857
    %v860 = vpop.permute.xlu0 %859
    %vm861 = vcmp.eq.s32.totalorder %v860, 1
    %v862 = vsel %vm861, %v850, %v724
    %v863 = vsel %vm861, %v856, %v725
    %865 = vrot.lane.b32.xlu0 %v863, 32
    %v866 = vpop.permute.xlu0 %865
    %869 = vrot.lane.b32.xlu0 %v790, 64
    %v870 = vpop.permute.xlu0 %869
    %v872 = vsel %vm203, %v866, %v870
    %v873 = vpack.c.bf16 %v872, %v872
    %v875 = vsel %vm314, %v873, 0
    %877 = vmatpush.bf16.msra.mxu0 0
    %878 = vmatpush.bf16.msra.mxu0 0
    %879 = vmatpush.bf16.msra.mxu0 0
    %880 = vmatpush.bf16.msra.mxu0 0
    %881 = vmatpush.bf16.msra.mxu0 %v309
    %882 = vmatpush.bf16.msra.mxu0 %v308
    %883 = vmatpush.bf16.msra.mxu0 %v307
    %884 = vmatpush.bf16.msra.mxu0 %v306
    %885 = vmatmul.bf16.gmra.mxu0 %v875
    %v886 = vpop.f32.mrf.mxu0
    %v887 = vadd.f32 %v288, %v886
    %v888 = vpop.f32.mrf.mxu0
    %889 = vdwg.mxu0
    %v890 = vxor.u32 %v887, 2147483648
    %v891 = vmul.f32 %v890, 1.442695
    %v892 = vpow.pop %v891
    %v893 = vadd.f32 %v892, 1.0
    %v894 = vrcp.pop %v893
    %v895 = vmul.f32 %v893, %v894
    %v896 = vsub.f32 1.0, %v895
    %v897 = vmul.f32 %v894, %v896
    %v898 = vadd.f32 %v894, %v897
    %vm899 = vweird.f32 %v893
    %vm900 = vweird.f32 %v894
    %vm901 = vmor %vm899, %vm900
    %v902 = vsel %vm901, %v894, %v898
    %v903 = vand.u32 2147483647, %v893
    %vm904 = vcmp.eq.f32.partialorder %v903, 8.507059e+37
    %v905 = vand.u32 %v893, 2147483648
    %v906 = vor.u32 1.1754944e-38, %v905
    %v907 = vsel %vm904, %v906, %v902
    %v908 = vmul.f32 1.0, %v907
    %v909 = vtanh.pop %v887
    %v910 = vmul.f32 %v908, %v789
    %912 = vrot.lane.b32.xlu0 %v909, 64
    %v913 = vpop.permute.xlu0 %912
    %v915 = vmul.f32 %v908, %v913
    %917 = vrot.lane.b32.xlu0 %v915, 32
    %v918 = vpop.permute.xlu0 %917
    %v920 = vadd.f32 %v910, %v918
    %v921 = vtanh.pop %v920
    %923 = vrot.lane.b32.xlu0 %v921, 64
    %v924 = vpop.permute.xlu0 %923
    %v926 = vmul.f32 %v908, %v924
    %v927 = vsel %vm861, %v920, %v789
    %v928 = vsel %vm861, %v926, %v790
    %v929 = vsel %vm861, %v926, 0.5
    %931 = vrot.lane.b32.xlu0 %v929, 32
    %v932 = vpop.permute.xlu0 %931
    %934 = vst.msk [vmem:[#allocation3 + $0x20] sm:$0xff] %vm203, %v932
    %v935 = vld [vmem:[#allocation2 + $0x28] sm:$0xff]
    %v936 = vpack.c.bf16 %v863, %v863
    %938 = vrot.lane.b32.xlu0 %v936, 32
    %v939 = vpop.permute.xlu0 %938
    %v941 = vsel %vm203, %v939, 0
    %943 = vmatpush.bf16.msra.mxu0 0
    %944 = vmatpush.bf16.msra.mxu0 0
    %945 = vmatpush.bf16.msra.mxu0 0
    %946 = vmatpush.bf16.msra.mxu0 0
    %947 = vmatpush.bf16.msra.mxu0 0
    %948 = vmatpush.bf16.msra.mxu0 0
    %949 = vmatpush.bf16.msra.mxu0 %v200
    %950 = vmatpush.bf16.msra.mxu0 %v199
    %951 = vmatmul.bf16.gmra.mxu0 %v941
    %v952 = vpop.f32.mrf.mxu0
    %v953 = vadd.f32 0.0, %v952
    %v954 = vpop.f32.mrf.mxu0
    %955 = vdwg.mxu0
    %v956 = vadd.f32 %v935, %v953
    %v957 = vadd.f32 %v956, %v222
    %v958 = vxor.u32 %v957, 2147483648
    %v959 = vmul.f32 %v958, 1.442695
    %v960 = vpow.pop %v959
    %v961 = vadd.f32 %v960, 1.0
    %v962 = vrcp.pop %v961
    %v963 = vmul.f32 %v961, %v962
    %v964 = vsub.f32 1.0, %v963
    %v965 = vmul.f32 %v962, %v964
    %v966 = vadd.f32 %v962, %v965
    %vm967 = vweird.f32 %v961
    %vm968 = vweird.f32 %v962
    %vm969 = vmor %vm967, %vm968
    %v970 = vsel %vm969, %v962, %v966
    %v971 = vand.u32 2147483647, %v961
    %vm972 = vcmp.eq.f32.partialorder %v971, 8.507059e+37
    %v973 = vand.u32 %v961, 2147483648
    %v974 = vor.u32 1.1754944e-38, %v973
    %v975 = vsel %vm972, %v974, %v970
    %v976 = vmul.f32 1.0, %v975
    %v977 = vtanh.pop %v957
    %v978 = vmul.f32 %v976, %v862
    %980 = vrot.lane.b32.xlu0 %v977, 64
    %v981 = vpop.permute.xlu0 %980
    %v983 = vmul.f32 %v976, %v981
    %985 = vrot.lane.b32.xlu0 %v983, 32
    %v986 = vpop.permute.xlu0 %985
    %v988 = vadd.f32 %v978, %v986
    %v989 = vtanh.pop %v988
    %991 = vrot.lane.b32.xlu0 %v989, 64
    %v992 = vpop.permute.xlu0 %991
    %v994 = vmul.f32 %v976, %v992
    %v995 = vsel %vm78, 1, 0
    %996 = vset.pattern.permute.xlu0 0
    %997 = vperm.xlu0 %996, %v995
    %v998 = vpop.permute.xlu0 %997
    %vm999 = vcmp.eq.s32.totalorder %v998, 1
    %v1000 = vsel %vm999, %v988, %v862
    %v1001 = vsel %vm999, %v994, %v863
    %1003 = vrot.lane.b32.xlu0 %v1001, 32
    %v1004 = vpop.permute.xlu0 %1003
    %1007 = vrot.lane.b32.xlu0 %v928, 64
    %v1008 = vpop.permute.xlu0 %1007
    %v1010 = vsel %vm203, %v1004, %v1008
    %v1011 = vpack.c.bf16 %v1010, %v1010
    %v1013 = vsel %vm314, %v1011, 0
    %1015 = vmatpush.bf16.msra.mxu0 0
    %1016 = vmatpush.bf16.msra.mxu0 0
    %1017 = vmatpush.bf16.msra.mxu0 0
    %1018 = vmatpush.bf16.msra.mxu0 0
    %1019 = vmatpush.bf16.msra.mxu0 %v309
    %1020 = vmatpush.bf16.msra.mxu0 %v308
    %1021 = vmatpush.bf16.msra.mxu0 %v307
    %1022 = vmatpush.bf16.msra.mxu0 %v306
    %1023 = vmatmul.bf16.gmra.mxu0 %v1013
    %v1024 = vpop.f32.mrf.mxu0
    %v1025 = vadd.f32 %v288, %v1024
    %v1026 = vpop.f32.mrf.mxu0
    %1027 = vdwg.mxu0
    %v1028 = vxor.u32 %v1025, 2147483648
    %v1029 = vmul.f32 %v1028, 1.442695
    %v1030 = vpow.pop %v1029
    %v1031 = vadd.f32 %v1030, 1.0
    %v1032 = vrcp.pop %v1031
    %v1033 = vmul.f32 %v1031, %v1032
    %v1034 = vsub.f32 1.0, %v1033
    %v1035 = vmul.f32 %v1032, %v1034
    %v1036 = vadd.f32 %v1032, %v1035
    %vm1037 = vweird.f32 %v1031
    %vm1038 = vweird.f32 %v1032
    %vm1039 = vmor %vm1037, %vm1038
    %v1040 = vsel %vm1039, %v1032, %v1036
    %v1041 = vand.u32 2147483647, %v1031
    %vm1042 = vcmp.eq.f32.partialorder %v1041, 8.507059e+37
    %v1043 = vand.u32 %v1031, 2147483648
    %v1044 = vor.u32 1.1754944e-38, %v1043
    %v1045 = vsel %vm1042, %v1044, %v1040
    %v1046 = vmul.f32 1.0, %v1045
    %v1047 = vtanh.pop %v1025
    %v1048 = vmul.f32 %v1046, %v927
    %1050 = vrot.lane.b32.xlu0 %v1047, 64
    %v1051 = vpop.permute.xlu0 %1050
    %v1053 = vmul.f32 %v1046, %v1051
    %1055 = vrot.lane.b32.xlu0 %v1053, 32
    %v1056 = vpop.permute.xlu0 %1055
    %v1058 = vadd.f32 %v1048, %v1056
    %v1059 = vtanh.pop %v1058
    %1061 = vrot.lane.b32.xlu0 %v1059, 64
    %v1062 = vpop.permute.xlu0 %1061
    %v1064 = vmul.f32 %v1046, %v1062
    %v1065 = vsel %vm999, %v1058, %v927
    %v1066 = vsel %vm999, %v1064, %v928
    %v1067 = vsel %vm999, %v1064, 0.5
    %1069 = vrot.lane.b32.xlu0 %v1067, 32
    %v1070 = vpop.permute.xlu0 %1069
    %1072 = vst.msk [vmem:[#allocation3 + $0x28] sm:$0xff] %vm203, %v1070
    %v1073 = vld [vmem:[#allocation2 + $0x30] sm:$0xff]
    %v1074 = vpack.c.bf16 %v1001, %v1001
    %1076 = vrot.lane.b32.xlu0 %v1074, 32
    %v1077 = vpop.permute.xlu0 %1076
    %v1079 = vsel %vm203, %v1077, 0
    %1081 = vmatpush.bf16.msra.mxu0 0
    %1082 = vmatpush.bf16.msra.mxu0 0
    %1083 = vmatpush.bf16.msra.mxu0 0
    %1084 = vmatpush.bf16.msra.mxu0 0
    %1085 = vmatpush.bf16.msra.mxu0 0
    %1086 = vmatpush.bf16.msra.mxu0 0
    %1087 = vmatpush.bf16.msra.mxu0 %v200
    %1088 = vmatpush.bf16.msra.mxu0 %v199
    %1089 = vmatmul.bf16.gmra.mxu0 %v1079
    %v1090 = vpop.f32.mrf.mxu0
    %v1091 = vadd.f32 0.0, %v1090
    %v1092 = vpop.f32.mrf.mxu0
    %1093 = vdwg.mxu0
    %v1094 = vadd.f32 %v1073, %v1091
    %v1095 = vadd.f32 %v1094, %v222
    %v1096 = vxor.u32 %v1095, 2147483648
    %v1097 = vmul.f32 %v1096, 1.442695
    %v1098 = vpow.pop %v1097
    %v1099 = vadd.f32 %v1098, 1.0
    %v1100 = vrcp.pop %v1099
    %v1101 = vmul.f32 %v1099, %v1100
    %v1102 = vsub.f32 1.0, %v1101
    %v1103 = vmul.f32 %v1100, %v1102
    %v1104 = vadd.f32 %v1100, %v1103
    %vm1105 = vweird.f32 %v1099
    %vm1106 = vweird.f32 %v1100
    %vm1107 = vmor %vm1105, %vm1106
    %v1108 = vsel %vm1107, %v1100, %v1104
    %v1109 = vand.u32 2147483647, %v1099
    %vm1110 = vcmp.eq.f32.partialorder %v1109, 8.507059e+37
    %v1111 = vand.u32 %v1099, 2147483648
    %v1112 = vor.u32 1.1754944e-38, %v1111
    %v1113 = vsel %vm1110, %v1112, %v1108
    %v1114 = vmul.f32 1.0, %v1113
    %v1115 = vtanh.pop %v1095
    %v1116 = vmul.f32 %v1114, %v1000
    %1118 = vrot.lane.b32.xlu0 %v1115, 64
    %v1119 = vpop.permute.xlu0 %1118
    %v1121 = vmul.f32 %v1114, %v1119
    %1123 = vrot.lane.b32.xlu0 %v1121, 32
    %v1124 = vpop.permute.xlu0 %1123
    %v1126 = vadd.f32 %v1116, %v1124
    %v1127 = vtanh.pop %v1126
    %1129 = vrot.lane.b32.xlu0 %v1127, 64
    %v1130 = vpop.permute.xlu0 %1129
    %v1132 = vmul.f32 %v1114, %v1130
    %v1133 = vsel %vm79, 1, 0
    %1134 = vset.pattern.permute.xlu0 0
    %1135 = vperm.xlu0 %1134, %v1133
    %v1136 = vpop.permute.xlu0 %1135
    %vm1137 = vcmp.eq.s32.totalorder %v1136, 1
    %v1138 = vsel %vm1137, %v1126, %v1000
    %v1139 = vsel %vm1137, %v1132, %v1001
    %1141 = vrot.lane.b32.xlu0 %v1139, 32
    %v1142 = vpop.permute.xlu0 %1141
    %1145 = vrot.lane.b32.xlu0 %v1066, 64
    %v1146 = vpop.permute.xlu0 %1145
    %v1148 = vsel %vm203, %v1142, %v1146
    %v1149 = vpack.c.bf16 %v1148, %v1148
    %v1151 = vsel %vm314, %v1149, 0
    %1153 = vmatpush.bf16.msra.mxu0 0
    %1154 = vmatpush.bf16.msra.mxu0 0
    %1155 = vmatpush.bf16.msra.mxu0 0
    %1156 = vmatpush.bf16.msra.mxu0 0
    %1157 = vmatpush.bf16.msra.mxu0 %v309
    %1158 = vmatpush.bf16.msra.mxu0 %v308
    %1159 = vmatpush.bf16.msra.mxu0 %v307
    %1160 = vmatpush.bf16.msra.mxu0 %v306
    %1161 = vmatmul.bf16.gmra.mxu0 %v1151
    %v1162 = vpop.f32.mrf.mxu0
    %v1163 = vadd.f32 %v288, %v1162
    %v1164 = vpop.f32.mrf.mxu0
    %1165 = vdwg.mxu0
    %v1166 = vxor.u32 %v1163, 2147483648
    %v1167 = vmul.f32 %v1166, 1.442695
    %v1168 = vpow.pop %v1167
    %v1169 = vadd.f32 %v1168, 1.0
    %v1170 = vrcp.pop %v1169
    %v1171 = vmul.f32 %v1169, %v1170
    %v1172 = vsub.f32 1.0, %v1171
    %v1173 = vmul.f32 %v1170, %v1172
    %v1174 = vadd.f32 %v1170, %v1173
    %vm1175 = vweird.f32 %v1169
    %vm1176 = vweird.f32 %v1170
    %vm1177 = vmor %vm1175, %vm1176
    %v1178 = vsel %vm1177, %v1170, %v1174
    %v1179 = vand.u32 2147483647, %v1169
    %vm1180 = vcmp.eq.f32.partialorder %v1179, 8.507059e+37
    %v1181 = vand.u32 %v1169, 2147483648
    %v1182 = vor.u32 1.1754944e-38, %v1181
    %v1183 = vsel %vm1180, %v1182, %v1178
    %v1184 = vmul.f32 1.0, %v1183
    %v1185 = vtanh.pop %v1163
    %v1186 = vmul.f32 %v1184, %v1065
    %1188 = vrot.lane.b32.xlu0 %v1185, 64
    %v1189 = vpop.permute.xlu0 %1188
    %v1191 = vmul.f32 %v1184, %v1189
    %1193 = vrot.lane.b32.xlu0 %v1191, 32
    %v1194 = vpop.permute.xlu0 %1193
    %v1196 = vadd.f32 %v1186, %v1194
    %v1197 = vtanh.pop %v1196
    %1199 = vrot.lane.b32.xlu0 %v1197, 64
    %v1200 = vpop.permute.xlu0 %1199
    %v1202 = vmul.f32 %v1184, %v1200
    %v1203 = vsel %vm1137, %v1196, %v1065
    %v1204 = vsel %vm1137, %v1202, %v1066
    %v1205 = vsel %vm1137, %v1202, 0.5
    %1207 = vrot.lane.b32.xlu0 %v1205, 32
    %v1208 = vpop.permute.xlu0 %1207
    %1210 = vst.msk [vmem:[#allocation3 + $0x30] sm:$0xff] %vm203, %v1208
    %v1211 = vld [vmem:[#allocation2 + $0x38] sm:$0xff]
    %v1212 = vpack.c.bf16 %v1139, %v1139
    %1214 = vrot.lane.b32.xlu0 %v1212, 32
    %v1215 = vpop.permute.xlu0 %1214
    %v1217 = vsel %vm203, %v1215, 0
    %1219 = vmatpush.bf16.msra.mxu0 0
    %1220 = vmatpush.bf16.msra.mxu0 0
    %1221 = vmatpush.bf16.msra.mxu0 0
    %1222 = vmatpush.bf16.msra.mxu0 0
    %1223 = vmatpush.bf16.msra.mxu0 0
    %1224 = vmatpush.bf16.msra.mxu0 0
    %1225 = vmatpush.bf16.msra.mxu0 %v200
    %1226 = vmatpush.bf16.msra.mxu0 %v199
    %1227 = vmatmul.bf16.gmra.mxu0 %v1217
    %v1228 = vpop.f32.mrf.mxu0
    %v1229 = vadd.f32 0.0, %v1228
    %v1230 = vpop.f32.mrf.mxu0
    %1231 = vdwg.mxu0
    %v1232 = vadd.f32 %v1211, %v1229
    %v1233 = vadd.f32 %v1232, %v222
    %v1234 = vxor.u32 %v1233, 2147483648
    %v1235 = vmul.f32 %v1234, 1.442695
    %v1236 = vpow.pop %v1235
    %v1237 = vadd.f32 %v1236, 1.0
    %v1238 = vrcp.pop %v1237
    %v1239 = vmul.f32 %v1237, %v1238
    %v1240 = vsub.f32 1.0, %v1239
    %v1241 = vmul.f32 %v1238, %v1240
    %v1242 = vadd.f32 %v1238, %v1241
    %vm1243 = vweird.f32 %v1237
    %vm1244 = vweird.f32 %v1238
    %vm1245 = vmor %vm1243, %vm1244
    %v1246 = vsel %vm1245, %v1238, %v1242
    %v1247 = vand.u32 2147483647, %v1237
    %vm1248 = vcmp.eq.f32.partialorder %v1247, 8.507059e+37
    %v1249 = vand.u32 %v1237, 2147483648
    %v1250 = vor.u32 1.1754944e-38, %v1249
    %v1251 = vsel %vm1248, %v1250, %v1246
    %v1252 = vmul.f32 1.0, %v1251
    %v1253 = vtanh.pop %v1233
    %v1254 = vmul.f32 %v1252, %v1138
    %1256 = vrot.lane.b32.xlu0 %v1253, 64
    %v1257 = vpop.permute.xlu0 %1256
    %v1259 = vmul.f32 %v1252, %v1257
    %1261 = vrot.lane.b32.xlu0 %v1259, 32
    %v1262 = vpop.permute.xlu0 %1261
    %v1264 = vadd.f32 %v1254, %v1262
    %v1265 = vtanh.pop %v1264
    %1267 = vrot.lane.b32.xlu0 %v1265, 64
    %v1268 = vpop.permute.xlu0 %1267
    %v1270 = vmul.f32 %v1252, %v1268
    %v1271 = vsel %vm80, 1, 0
    %1272 = vset.pattern.permute.xlu0 0
    %1273 = vperm.xlu0 %1272, %v1271
    %v1274 = vpop.permute.xlu0 %1273
    %vm1275 = vcmp.eq.s32.totalorder %v1274, 1
    %v1276 = vsel %vm1275, %v1264, %v1138
    %v1277 = vsel %vm1275, %v1270, %v1139
    %1279 = vrot.lane.b32.xlu0 %v1277, 32
    %v1280 = vpop.permute.xlu0 %1279
    %1283 = vrot.lane.b32.xlu0 %v1204, 64
    %v1284 = vpop.permute.xlu0 %1283
    %v1286 = vsel %vm203, %v1280, %v1284
    %v1287 = vpack.c.bf16 %v1286, %v1286
    %v1289 = vsel %vm314, %v1287, 0
    %1291 = vmatpush.bf16.msra.mxu0 0
    %1292 = vmatpush.bf16.msra.mxu0 0
    %1293 = vmatpush.bf16.msra.mxu0 0
    %1294 = vmatpush.bf16.msra.mxu0 0
    %1295 = vmatpush.bf16.msra.mxu0 %v309
    %1296 = vmatpush.bf16.msra.mxu0 %v308
    %1297 = vmatpush.bf16.msra.mxu0 %v307
    %1298 = vmatpush.bf16.msra.mxu0 %v306
    %1299 = vmatmul.bf16.gmra.mxu0 %v1289
    %v1300 = vpop.f32.mrf.mxu0
    %v1301 = vadd.f32 %v288, %v1300
    %v1302 = vpop.f32.mrf.mxu0
    %1303 = vdwg.mxu0
    %v1304 = vxor.u32 %v1301, 2147483648
    %v1305 = vmul.f32 %v1304, 1.442695
    %v1306 = vpow.pop %v1305
    %v1307 = vadd.f32 %v1306, 1.0
    %v1308 = vrcp.pop %v1307
    %v1309 = vmul.f32 %v1307, %v1308
    %v1310 = vsub.f32 1.0, %v1309
    %v1311 = vmul.f32 %v1308, %v1310
    %v1312 = vadd.f32 %v1308, %v1311
    %vm1313 = vweird.f32 %v1307
    %vm1314 = vweird.f32 %v1308
    %vm1315 = vmor %vm1313, %vm1314
    %v1316 = vsel %vm1315, %v1308, %v1312
    %v1317 = vand.u32 2147483647, %v1307
    %vm1318 = vcmp.eq.f32.partialorder %v1317, 8.507059e+37
    %v1319 = vand.u32 %v1307, 2147483648
    %v1320 = vor.u32 1.1754944e-38, %v1319
    %v1321 = vsel %vm1318, %v1320, %v1316
    %v1322 = vmul.f32 1.0, %v1321
    %v1323 = vtanh.pop %v1301
    %v1324 = vmul.f32 %v1322, %v1203
    %1326 = vrot.lane.b32.xlu0 %v1323, 64
    %v1327 = vpop.permute.xlu0 %1326
    %v1329 = vmul.f32 %v1322, %v1327
    %1331 = vrot.lane.b32.xlu0 %v1329, 32
    %v1332 = vpop.permute.xlu0 %1331
    %v1334 = vadd.f32 %v1324, %v1332
    %v1335 = vtanh.pop %v1334
    %1337 = vrot.lane.b32.xlu0 %v1335, 64
    %v1338 = vpop.permute.xlu0 %1337
    %v1340 = vmul.f32 %v1322, %v1338
    %v1341 = vsel %vm1275, %v1334, %v1203
    %v1342 = vsel %vm1275, %v1340, %v1204
    %v1343 = vsel %vm1275, %v1340, 0.5
    %1345 = vrot.lane.b32.xlu0 %v1343, 32
    %v1346 = vpop.permute.xlu0 %1345
    %1348 = vst.msk [vmem:[#allocation3 + $0x38] sm:$0xff] %vm203, %v1346
    %v1349 = vld [vmem:[#allocation2 + $0x40] sm:$0xff]
    %v1350 = vpack.c.bf16 %v1277, %v1277
    %1352 = vrot.lane.b32.xlu0 %v1350, 32
    %v1353 = vpop.permute.xlu0 %1352
    %v1355 = vsel %vm203, %v1353, 0
    %1357 = vmatpush.bf16.msra.mxu0 0
    %1358 = vmatpush.bf16.msra.mxu0 0
    %1359 = vmatpush.bf16.msra.mxu0 0
    %1360 = vmatpush.bf16.msra.mxu0 0
    %1361 = vmatpush.bf16.msra.mxu0 0
    %1362 = vmatpush.bf16.msra.mxu0 0
    %1363 = vmatpush.bf16.msra.mxu0 %v200
    %1364 = vmatpush.bf16.msra.mxu0 %v199
    %1365 = vmatmul.bf16.gmra.mxu0 %v1355
    %v1366 = vpop.f32.mrf.mxu0
    %v1367 = vadd.f32 0.0, %v1366
    %v1368 = vpop.f32.mrf.mxu0
    %1369 = vdwg.mxu0
    %v1370 = vadd.f32 %v1349, %v1367
    %v1371 = vadd.f32 %v1370, %v222
    %v1372 = vxor.u32 %v1371, 2147483648
    %v1373 = vmul.f32 %v1372, 1.442695
    %v1374 = vpow.pop %v1373
    %v1375 = vadd.f32 %v1374, 1.0
    %v1376 = vrcp.pop %v1375
    %v1377 = vmul.f32 %v1375, %v1376
    %v1378 = vsub.f32 1.0, %v1377
    %v1379 = vmul.f32 %v1376, %v1378
    %v1380 = vadd.f32 %v1376, %v1379
    %vm1381 = vweird.f32 %v1375
    %vm1382 = vweird.f32 %v1376
    %vm1383 = vmor %vm1381, %vm1382
    %v1384 = vsel %vm1383, %v1376, %v1380
    %v1385 = vand.u32 2147483647, %v1375
    %vm1386 = vcmp.eq.f32.partialorder %v1385, 8.507059e+37
    %v1387 = vand.u32 %v1375, 2147483648
    %v1388 = vor.u32 1.1754944e-38, %v1387
    %v1389 = vsel %vm1386, %v1388, %v1384
    %v1390 = vmul.f32 1.0, %v1389
    %v1391 = vtanh.pop %v1371
    %v1392 = vmul.f32 %v1390, %v1276
    %1394 = vrot.lane.b32.xlu0 %v1391, 64
    %v1395 = vpop.permute.xlu0 %1394
    %v1397 = vmul.f32 %v1390, %v1395
    %1399 = vrot.lane.b32.xlu0 %v1397, 32
    %v1400 = vpop.permute.xlu0 %1399
    %v1402 = vadd.f32 %v1392, %v1400
    %v1403 = vtanh.pop %v1402
    %1405 = vrot.lane.b32.xlu0 %v1403, 64
    %v1406 = vpop.permute.xlu0 %1405
    %v1408 = vmul.f32 %v1390, %v1406
    %v1409 = vsel %vm81, 1, 0
    %1410 = vset.pattern.permute.xlu0 0
    %1411 = vperm.xlu0 %1410, %v1409
    %v1412 = vpop.permute.xlu0 %1411
    %vm1413 = vcmp.eq.s32.totalorder %v1412, 1
    %v1414 = vsel %vm1413, %v1402, %v1276
    %v1415 = vsel %vm1413, %v1408, %v1277
    %1417 = vrot.lane.b32.xlu0 %v1415, 32
    %v1418 = vpop.permute.xlu0 %1417
    %1421 = vrot.lane.b32.xlu0 %v1342, 64
    %v1422 = vpop.permute.xlu0 %1421
    %v1424 = vsel %vm203, %v1418, %v1422
    %v1425 = vpack.c.bf16 %v1424, %v1424
    %v1427 = vsel %vm314, %v1425, 0
    %1429 = vmatpush.bf16.msra.mxu0 0
    %1430 = vmatpush.bf16.msra.mxu0 0
    %1431 = vmatpush.bf16.msra.mxu0 0
    %1432 = vmatpush.bf16.msra.mxu0 0
    %1433 = vmatpush.bf16.msra.mxu0 %v309
    %1434 = vmatpush.bf16.msra.mxu0 %v308
    %1435 = vmatpush.bf16.msra.mxu0 %v307
    %1436 = vmatpush.bf16.msra.mxu0 %v306
    %1437 = vmatmul.bf16.gmra.mxu0 %v1427
    %v1438 = vpop.f32.mrf.mxu0
    %v1439 = vadd.f32 %v288, %v1438
    %v1440 = vpop.f32.mrf.mxu0
    %1441 = vdwg.mxu0
    %v1442 = vxor.u32 %v1439, 2147483648
    %v1443 = vmul.f32 %v1442, 1.442695
    %v1444 = vpow.pop %v1443
    %v1445 = vadd.f32 %v1444, 1.0
    %v1446 = vrcp.pop %v1445
    %v1447 = vmul.f32 %v1445, %v1446
    %v1448 = vsub.f32 1.0, %v1447
    %v1449 = vmul.f32 %v1446, %v1448
    %v1450 = vadd.f32 %v1446, %v1449
    %vm1451 = vweird.f32 %v1445
    %vm1452 = vweird.f32 %v1446
    %vm1453 = vmor %vm1451, %vm1452
    %v1454 = vsel %vm1453, %v1446, %v1450
    %v1455 = vand.u32 2147483647, %v1445
    %vm1456 = vcmp.eq.f32.partialorder %v1455, 8.507059e+37
    %v1457 = vand.u32 %v1445, 2147483648
    %v1458 = vor.u32 1.1754944e-38, %v1457
    %v1459 = vsel %vm1456, %v1458, %v1454
    %v1460 = vmul.f32 1.0, %v1459
    %v1461 = vtanh.pop %v1439
    %v1462 = vmul.f32 %v1460, %v1341
    %1464 = vrot.lane.b32.xlu0 %v1461, 64
    %v1465 = vpop.permute.xlu0 %1464
    %v1467 = vmul.f32 %v1460, %v1465
    %1469 = vrot.lane.b32.xlu0 %v1467, 32
    %v1470 = vpop.permute.xlu0 %1469
    %v1472 = vadd.f32 %v1462, %v1470
    %v1473 = vtanh.pop %v1472
    %1475 = vrot.lane.b32.xlu0 %v1473, 64
    %v1476 = vpop.permute.xlu0 %1475
    %v1478 = vmul.f32 %v1460, %v1476
    %v1479 = vsel %vm1413, %v1472, %v1341
    %v1480 = vsel %vm1413, %v1478, %v1342
    %v1481 = vsel %vm1413, %v1478, 0.5
    %1483 = vrot.lane.b32.xlu0 %v1481, 32
    %v1484 = vpop.permute.xlu0 %1483
    %1486 = vst.msk [vmem:[#allocation3 + $0x40] sm:$0xff] %vm203, %v1484
    %v1487 = vld [vmem:[#allocation2 + $0x48] sm:$0xff]
    %v1488 = vpack.c.bf16 %v1415, %v1415
    %1490 = vrot.lane.b32.xlu0 %v1488, 32
    %v1491 = vpop.permute.xlu0 %1490
    %v1493 = vsel %vm203, %v1491, 0
    %1495 = vmatpush.bf16.msra.mxu0 0
    %1496 = vmatpush.bf16.msra.mxu0 0
    %1497 = vmatpush.bf16.msra.mxu0 0
    %1498 = vmatpush.bf16.msra.mxu0 0
    %1499 = vmatpush.bf16.msra.mxu0 0
    %1500 = vmatpush.bf16.msra.mxu0 0
    %1501 = vmatpush.bf16.msra.mxu0 %v200
    %1502 = vmatpush.bf16.msra.mxu0 %v199
    %1503 = vmatmul.bf16.gmra.mxu0 %v1493
    %v1504 = vpop.f32.mrf.mxu0
    %v1505 = vadd.f32 0.0, %v1504
    %v1506 = vpop.f32.mrf.mxu0
    %1507 = vdwg.mxu0
    %v1508 = vadd.f32 %v1487, %v1505
    %v1509 = vadd.f32 %v1508, %v222
    %v1510 = vxor.u32 %v1509, 2147483648
    %v1511 = vmul.f32 %v1510, 1.442695
    %v1512 = vpow.pop %v1511
    %v1513 = vadd.f32 %v1512, 1.0
    %v1514 = vrcp.pop %v1513
    %v1515 = vmul.f32 %v1513, %v1514
    %v1516 = vsub.f32 1.0, %v1515
    %v1517 = vmul.f32 %v1514, %v1516
    %v1518 = vadd.f32 %v1514, %v1517
    %vm1519 = vweird.f32 %v1513
    %vm1520 = vweird.f32 %v1514
    %vm1521 = vmor %vm1519, %vm1520
    %v1522 = vsel %vm1521, %v1514, %v1518
    %v1523 = vand.u32 2147483647, %v1513
    %vm1524 = vcmp.eq.f32.partialorder %v1523, 8.507059e+37
    %v1525 = vand.u32 %v1513, 2147483648
    %v1526 = vor.u32 1.1754944e-38, %v1525
    %v1527 = vsel %vm1524, %v1526, %v1522
    %v1528 = vmul.f32 1.0, %v1527
    %v1529 = vtanh.pop %v1509
    %v1530 = vmul.f32 %v1528, %v1414
    %1532 = vrot.lane.b32.xlu0 %v1529, 64
    %v1533 = vpop.permute.xlu0 %1532
    %v1535 = vmul.f32 %v1528, %v1533
    %1537 = vrot.lane.b32.xlu0 %v1535, 32
    %v1538 = vpop.permute.xlu0 %1537
    %v1540 = vadd.f32 %v1530, %v1538
    %v1541 = vtanh.pop %v1540
    %1543 = vrot.lane.b32.xlu0 %v1541, 64
    %v1544 = vpop.permute.xlu0 %1543
    %v1546 = vmul.f32 %v1528, %v1544
    %v1547 = vsel %vm82, 1, 0
    %1548 = vset.pattern.permute.xlu0 0
    %1549 = vperm.xlu0 %1548, %v1547
    %v1550 = vpop.permute.xlu0 %1549
    %vm1551 = vcmp.eq.s32.totalorder %v1550, 1
    %v1552 = vsel %vm1551, %v1540, %v1414
    %v1553 = vsel %vm1551, %v1546, %v1415
    %1555 = vrot.lane.b32.xlu0 %v1553, 32
    %v1556 = vpop.permute.xlu0 %1555
    %1559 = vrot.lane.b32.xlu0 %v1480, 64
    %v1560 = vpop.permute.xlu0 %1559
    %v1562 = vsel %vm203, %v1556, %v1560
    %v1563 = vpack.c.bf16 %v1562, %v1562
    %v1565 = vsel %vm314, %v1563, 0
    %1567 = vmatpush.bf16.msra.mxu0 0
    %1568 = vmatpush.bf16.msra.mxu0 0
    %1569 = vmatpush.bf16.msra.mxu0 0
    %1570 = vmatpush.bf16.msra.mxu0 0
    %1571 = vmatpush.bf16.msra.mxu0 %v309
    %1572 = vmatpush.bf16.msra.mxu0 %v308
    %1573 = vmatpush.bf16.msra.mxu0 %v307
    %1574 = vmatpush.bf16.msra.mxu0 %v306
    %1575 = vmatmul.bf16.gmra.mxu0 %v1565
    %v1576 = vpop.f32.mrf.mxu0
    %v1577 = vadd.f32 %v288, %v1576
    %v1578 = vpop.f32.mrf.mxu0
    %1579 = vdwg.mxu0
    %v1580 = vxor.u32 %v1577, 2147483648
    %v1581 = vmul.f32 %v1580, 1.442695
    %v1582 = vpow.pop %v1581
    %v1583 = vadd.f32 %v1582, 1.0
    %v1584 = vrcp.pop %v1583
    %v1585 = vmul.f32 %v1583, %v1584
    %v1586 = vsub.f32 1.0, %v1585
    %v1587 = vmul.f32 %v1584, %v1586
    %v1588 = vadd.f32 %v1584, %v1587
    %vm1589 = vweird.f32 %v1583
    %vm1590 = vweird.f32 %v1584
    %vm1591 = vmor %vm1589, %vm1590
    %v1592 = vsel %vm1591, %v1584, %v1588
    %v1593 = vand.u32 2147483647, %v1583
    %vm1594 = vcmp.eq.f32.partialorder %v1593, 8.507059e+37
    %v1595 = vand.u32 %v1583, 2147483648
    %v1596 = vor.u32 1.1754944e-38, %v1595
    %v1597 = vsel %vm1594, %v1596, %v1592
    %v1598 = vmul.f32 1.0, %v1597
    %v1599 = vtanh.pop %v1577
    %v1600 = vmul.f32 %v1598, %v1479
    %1602 = vrot.lane.b32.xlu0 %v1599, 64
    %v1603 = vpop.permute.xlu0 %1602
    %v1605 = vmul.f32 %v1598, %v1603
    %1607 = vrot.lane.b32.xlu0 %v1605, 32
    %v1608 = vpop.permute.xlu0 %1607
    %v1610 = vadd.f32 %v1600, %v1608
    %v1611 = vtanh.pop %v1610
    %1613 = vrot.lane.b32.xlu0 %v1611, 64
    %v1614 = vpop.permute.xlu0 %1613
    %v1616 = vmul.f32 %v1598, %v1614
    %v1617 = vsel %vm1551, %v1610, %v1479
    %v1618 = vsel %vm1551, %v1616, %v1480
    %v1619 = vsel %vm1551, %v1616, 0.5
    %1621 = vrot.lane.b32.xlu0 %v1619, 32
    %v1622 = vpop.permute.xlu0 %1621
    %1624 = vst.msk [vmem:[#allocation3 + $0x48] sm:$0xff] %vm203, %v1622
    %1625 = vst.msk [vmem:[#allocation7] sm:$0xff] %vm203, %v1556
    %1627 = vrot.lane.b32.xlu0 %v1552, 96
    %v1628 = vpop.permute.xlu0 %1627
    %1630 = vst.msk [vmem:[#allocation7 + $0x10] sm:$0xff] %vm203, %v1628
    %1632 = vrot.lane.b32.xlu0 %v1618, 32
    %v1633 = vpop.permute.xlu0 %1632
    %1635 = vst.msk [vmem:[#allocation7 + $0x8] sm:$0xff] %vm203, %v1633
    %1637 = vrot.lane.b32.xlu0 %v1617, 96
    %v1638 = vpop.permute.xlu0 %1637
    %1640 = vst.msk [vmem:[#allocation7 + $0x18] sm:$0xff] %vm203, %v1638
    %v1641 = vld [vmem:[#allocation3] sm:$0xff]
    %v1642 = vld [vmem:[#allocation3 + $0x8] sm:$0xff]
    %v1643 = vld [vmem:[#allocation3 + $0x10] sm:$0xff]
    %v1644 = vld [vmem:[#allocation3 + $0x18] sm:$0xff]
    %v1645 = vld [vmem:[#allocation3 + $0x20] sm:$0xff]
    %v1646 = vld [vmem:[#allocation3 + $0x28] sm:$0xff]
    %v1647 = vld [vmem:[#allocation3 + $0x30] sm:$0xff]
    %v1648 = vld [vmem:[#allocation3 + $0x38] sm:$0xff]
    %v1649 = vld [vmem:[#allocation3 + $0x40] sm:$0xff]
    %v1650 = vld [vmem:[#allocation3 + $0x48] sm:$0xff]
    %v1651 = vpack.c.bf16 %v1642, %v1641
    %v1652 = vpack.c.bf16 %v1644, %v1643
    %v1653 = vpack.c.bf16 %v1646, %v1645
    %v1654 = vpack.c.bf16 %v1648, %v1647
    %v1655 = vpack.c.bf16 %v1650, %v1649
    %v1656 = vld [vmem:[%s9] sm:$0xf]
    %v1657 = vld [vmem:[%s9 + $0x4] sm:$0xf]
    %v1658 = vld [vmem:[%s9 + $0x8] sm:$0xf]
    %v1659 = vld [vmem:[%s9 + $0xc] sm:$0xf]
    %v1660 = vld [vmem:[%s10] sm:$0x1]
    %v1662 = vperm.slane %v1660, 0
    %v1668 = vunpack.c.l.b16 %v1656
    %v1669 = vunpack.c.l.b16 %v1657
    %v1670 = vunpack.c.l.b16 %v1658
    %v1671 = vunpack.c.l.b16 %v1659
    %v1672 = vpack.c.b16 %v1669, %v1668
    %v1673 = vpack.c.b16 %v1671, %v1670
    %v1677 = vsel %vm203, %v1651, 0
    %v1680 = vsel %vm203, %v1652, 0
    %v1683 = vsel %vm203, %v1653, 0
    %v1686 = vsel %vm203, %v1654, 0
    %v1689 = vsel %vm203, %v1655, 0
    %1691 = vmatpush.bf16.msra.mxu0 0
    %1692 = vmatpush.bf16.msra.mxu0 0
    %1693 = vmatpush.bf16.msra.mxu0 0
    %1694 = vmatpush.bf16.msra.mxu0 0
    %1695 = vmatpush.bf16.msra.mxu0 0
    %1696 = vmatpush.bf16.msra.mxu0 0
    %1697 = vmatpush.bf16.msra.mxu0 %v1673
    %1698 = vmatpush.bf16.msra.mxu0 %v1672
    %1699 = vmatmul.bf16.gmra.mxu0 %v1677
    %v1700 = vpop.f32.mrf.mxu0
    %v1701 = vadd.f32 %v1662, %v1700
    %v1702 = vpop.f32.mrf.mxu0
    %v1703 = vadd.f32 %v1662, %v1702
    %1704 = vmatmul.bf16.gmra.mxu0 %v1680
    %v1705 = vpop.f32.mrf.mxu0
    %v1706 = vadd.f32 %v1662, %v1705
    %v1707 = vpop.f32.mrf.mxu0
    %v1708 = vadd.f32 %v1662, %v1707
    %1709 = vmatmul.bf16.gmra.mxu0 %v1683
    %v1710 = vpop.f32.mrf.mxu0
    %v1711 = vadd.f32 %v1662, %v1710
    %v1712 = vpop.f32.mrf.mxu0
    %v1713 = vadd.f32 %v1662, %v1712
    %1714 = vmatmul.bf16.gmra.mxu0 %v1686
    %v1715 = vpop.f32.mrf.mxu0
    %v1716 = vadd.f32 %v1662, %v1715
    %v1717 = vpop.f32.mrf.mxu0
    %v1718 = vadd.f32 %v1662, %v1717
    %1719 = vmatmul.bf16.gmra.mxu0 %v1689
    %v1720 = vpop.f32.mrf.mxu0
    %v1721 = vadd.f32 %v1662, %v1720
    %v1722 = vpop.f32.mrf.mxu0
    %v1723 = vadd.f32 %v1662, %v1722
    %1724 = vdwg.mxu0
    %1725 = vst.msk [vmem:[%s11] sm:$0xff] %vm119, %v1701
    %1726 = vst.msk [vmem:[%s11 + $0x8] sm:$0xff] %vm119, %v1703
    %1727 = vst.msk [vmem:[%s11 + $0x10] sm:$0xff] %vm119, %v1706
    %1728 = vst.msk [vmem:[%s11 + $0x18] sm:$0xff] %vm119, %v1708
    %1729 = vst.msk [vmem:[%s11 + $0x20] sm:$0xff] %vm119, %v1711
    %1730 = vst.msk [vmem:[%s11 + $0x28] sm:$0xff] %vm119, %v1713
    %1731 = vst.msk [vmem:[%s11 + $0x30] sm:$0xff] %vm119, %v1716
    %1732 = vst.msk [vmem:[%s11 + $0x38] sm:$0xff] %vm119, %v1718
    %1733 = vst.msk [vmem:[%s11 + $0x40] sm:$0xff] %vm119, %v1721
    %1734 = vst.msk [vmem:[%s11 + $0x48] sm:$0xff] %vm119, %v1723
    // Predicated region
    $region50: #{tpu_custom_call.1} parent=1 // pred_check
      _
    $region51: #{tpu_custom_call.1} parent=1 // pred_check_branch
      %1736 = sbr.rel (0) target = $region53
    $region52: #{tpu_custom_call.1} parent=1 // pred_region
      _
    $region53: #{tpu_custom_call.1} parent=1 // pred_fallthru
      _
    // Predicated region
    $region54: #{tpu_custom_call.1} parent=1 // pred_check
      _
    $region55: #{tpu_custom_call.1} parent=1 // pred_check_branch
      %1738 = sbr.rel (0) target = $region57
    $region56: #{tpu_custom_call.1} parent=1 // pred_region
      %1740 = vsyncadd [#allocation6], 0
      %s1741 = sshll.u32 [#allocation7], 4
      %s1742 = int_to_ptr.vmem [resolvable:$true] %s1741
      %s1743 = sshll.u32 %s12, 4
      %s1744 = int_to_ptr.hbm [resolvable:$true] %s1743
      %1749 = dma.vmem_to_hbm [thread:$0]  %s1742, 512, %s1744, [#allocation6], 128, 128, 8
    $region57: #{tpu_custom_call.1} parent=1 // pred_fallthru
      _
    // Predicated region
    $region58: #{tpu_custom_call.1} parent=1 // pred_check
      _
    $region59: #{tpu_custom_call.1} parent=1 // pred_check_branch
      %1751 = sbr.rel (0) target = $region61
    $region60: #{tpu_custom_call.1} parent=1 // pred_region
      _
    $region61: #{tpu_custom_call.1} parent=1 // pred_fallthru
      _
    // Predicated region
    $region62: #{tpu_custom_call.1} parent=1 // pred_check
      _
    $region63: #{tpu_custom_call.1} parent=1 // pred_check_branch
      %1753 = sbr.rel (0) target = $region65
    $region64: #{tpu_custom_call.1} parent=1 // pred_region
      %1755 = dma.done [#allocation6], 512
    $region65: #{tpu_custom_call.1} parent=1 // pred_fallthru
      _
    %1756 = vsyncpa [#allocation5], 1
    %1757 = vsyncpa [#allocation6], 1

</llo_original>
